<compile_context>
chip_gen: v7x
topology: tpu7x:2x2x1
jax: 0.10.0
libtpu: 0.0.40
codegen_flags: <defaults>
</compile_context>

<pallas_src>
import functools

import jax
import jax.numpy as jnp
from jax import lax
from jax.experimental import pallas as pl
from jax.experimental.pallas import tpu as pltpu

LRELU_SLOPE = 0.2
# tap offsets (dh, dw) = (kh - 1, kw - 1), ordered kh-major / kw-minor (matches weight packing)
_TAPS = [(dh, dw) for dh in (-1, 0, 1) for dw in (-1, 0, 1)]


# --------------------------------- Pallas kernel ---------------------------------

def _adv_loss_kernel(real_ref, fake_ref, mask_ref, w1_ref, b1_ref, w2_ref,
                     b2_ref, adv_ref, fm_ref, *, H, W):
    # real_ref / fake_ref : (C, H*W)   one batch sample, spatial on lanes
    # mask_ref            : (9, H*W)   0/1 border-validity mask per tap (compile-time const)
    # w1_ref              : (F, 9*C)   conv1 weights packed for the im2col matmul
    # b1_ref              : (F, 1)     conv1 bias (lane-broadcast column)
    # w2_ref              : (8, 9*F)   conv2 weights, row 0 real, rows 1..7 zero (MXU M-pad)
    # b2_ref              : (1, 1)     conv2 bias scalar, in SMEM
    # adv_ref / fm_ref    : (1, 1, 128) per-block partial sums (lane-dense stores)
    HW = H * W

    # Hoisted loads / casts (reused by all 9 taps x 2 convs x 2 inputs).
    masks = mask_ref[...]                              # (9, HW) f32 of 0/1
    w1b = w1_ref[...].astype(jnp.bfloat16)             # (F, 9C)  bf16 MXU operand
    w2b = w2_ref[...].astype(jnp.bfloat16)             # (8, 9F)
    b1 = b1_ref[...]                                   # (F, 1)   f32
    b2 = b2_ref[0, 0]                                  # scalar from SMEM

    def tap(x, t, dh, dw):
        # x: (rows, HW).  Shift by (dh, dw) on the (H, W) grid with SAME-padding zeros:
        # a static lane rotate (XLU) + 0/1 mask multiply (VPU).  Positions whose rotate
        # wrapped across the image border are exactly the masked ones.
        off = dh * W + dw
        if off == 0:
            return x
        rolled = pltpu.roll(x, shift=(-off) % HW, axis=1)
        return rolled * masks[t:t + 1, :]

    def im2col(x):
        # (rows, HW) -> (9*rows, HW), row blocks ordered (kh, kw); single bf16 cast.
        return jnp.concatenate(
            [tap(x, t, dh, dw) for t, (dh, dw) in enumerate(_TAPS)],
            axis=0).astype(jnp.bfloat16)

    def discriminator(x):
        # conv1 (3x3, C->F, SAME) as ONE MXU matmul over the im2col buffer.
        y = jnp.dot(w1b, im2col(x), preferred_element_type=jnp.float32)    # (F, HW) f32
        y = y + b1
        h = jnp.where(y > 0, y, LRELU_SLOPE * y)                           # LeakyReLU(0.2)
        # conv2 (3x3, F->1, SAME) as ONE MXU matmul (output channels zero-padded to 8).
        p = jnp.dot(w2b, im2col(h), preferred_element_type=jnp.float32)    # (8, HW)
        return p[0:1, :] + b2                                              # (1, HW)

    pr = discriminator(real_ref[...])   # real predictions for this sample
    pf = discriminator(fake_ref[...])   # fake predictions

    # Hinge partial sums (normalized / weighted in the wrapper).
    adv_sum = (jnp.sum(jnp.maximum(1.0 - pr, 0.0)) +
               jnp.sum(jnp.maximum(1.0 + pf, 0.0)))
    adv_ref[...] = jnp.full(adv_ref.shape, adv_sum, jnp.float32)

    # Feature matching: preds[:-1] slices the batch, so the last sample is excluded.
    # Vectorized: one lane-dense |pr - pf| reduction per block.
    include = pl.program_id(0) < pl.num_programs(0) - 1
    fm_sum = jnp.where(include, jnp.sum(jnp.abs(pr - pf)), 0.0)
    fm_ref[...] = jnp.full(fm_ref.shape, fm_sum, jnp.float32)


# ----------------------------------- wrapper -----------------------------------

def _make_tap_masks(H, W):
    # 0/1 validity per tap: compile-time constant, folded by XLA.
    h = jnp.arange(H)[:, None]
    w = jnp.arange(W)[None, :]
    rows = []
    for dh, dw in _TAPS:
        valid = (h + dh >= 0) & (h + dh < H) & (w + dw >= 0) & (w + dw < W)
        rows.append(valid.reshape(1, H * W))
    return jnp.concatenate(rows, axis=0).astype(jnp.float32)       # (9, H*W)


def adversarial_loss_pallas(real_nchw, fake_nchw, params, feature_matching_weight=10.0):
    """real/fake are PyTorch-convention NCHW; returns the scalar total loss."""
    B, C, H, W = real_nchw.shape
    F = params['w1_mat'].shape[0]
    HW = H * W

    # Pure reshape (no data movement): spatial goes on the lane axis.
    real = real_nchw.reshape(B, C, HW)
    fake = fake_nchw.reshape(B, C, HW)
    tap_masks = _make_tap_masks(H, W)

    kernel = functools.partial(_adv_loss_kernel, H=H, W=W)

    adv_p, fm_p = pl.pallas_call(
        kernel,
        grid=(B,),
        in_specs=[
            pl.BlockSpec((None, C, HW), lambda b: (b, 0, 0)),      # real (one image/block)
            pl.BlockSpec((None, C, HW), lambda b: (b, 0, 0)),      # fake
            pl.BlockSpec((9, HW), lambda b: (0, 0)),               # tap masks
            pl.BlockSpec((F, 9 * C), lambda b: (0, 0)),            # w1 (im2col packed)
            pl.BlockSpec((F, 1), lambda b: (0, 0)),                # b1 column
            pl.BlockSpec((8, 9 * F), lambda b: (0, 0)),            # w2 (M padded to 8)
            pl.BlockSpec(memory_space=pltpu.MemorySpace.SMEM),     # b2 scalar
        ],
        out_specs=[
            pl.BlockSpec((1, 1, 128), lambda b: (b, 0, 0)),        # adv partial (lane-dense)
            pl.BlockSpec((1, 1, 128), lambda b: (b, 0, 0)),        # fm partial
        ],
        out_shape=[
            jax.ShapeDtypeStruct((B, 1, 128), jnp.float32),
            jax.ShapeDtypeStruct((B, 1, 128), jnp.float32),
        ],
        compiler_params=pltpu.CompilerParams(
            dimension_semantics=("parallel",),        # both v7x cores take batch blocks
            vmem_limit_bytes=32 * 1024 * 1024,
        ),
    )(real, fake, tap_masks, params['w1_mat'], params['b1_col'],
      params['w2_mat'], params['b2_s'])

    adv = 0.5 * jnp.sum(adv_p[:, 0, 0]) / (B * HW)
    fm = jnp.sum(fm_p[:, 0, 0]) / HW
    return adv + feature_matching_weight * fm


# ----------------------- deterministic parameter setup (glue) -----------------------

def _spectral_normalize(w_oihw, n_iter=20):
    # TODO(synk): torch.nn.utils.spectral_norm uses randomly-initialized power-iteration
    # buffers updated per forward; here we apply a deterministic power-iteration spectral
    # normalization to the synthetic weights instead.
    o = w_oihw.shape[0]
    m = w_oihw.reshape(o, -1).astype(jnp.float32)
    v = jnp.ones((m.shape[1],), jnp.float32) / jnp.sqrt(m.shape[1])
    u = jnp.ones((o,), jnp.float32) / jnp.sqrt(o)
    for _ in range(n_iter):
        u = m @ v
        u = u / (jnp.linalg.norm(u) + 1e-12)
        v = m.T @ u
        v = v / (jnp.linalg.norm(v) + 1e-12)
    sigma = u @ (m @ v)
    return w_oihw / sigma


def init_discriminator_params(key, C, F):
    k1, k2, k3, k4 = jax.random.split(key, 4)
    w1_oihw = _spectral_normalize(0.2 * jax.random.normal(k1, (F, C, 3, 3), jnp.float32))
    b1 = 0.1 * jax.random.normal(k2, (F,), jnp.float32)
    w2_oihw = _spectral_normalize(0.2 * jax.random.normal(k3, (1, F, 3, 3), jnp.float32))
    b2 = 0.1 * jax.random.normal(k4, (1,), jnp.float32)

    # Pack for the in-kernel im2col matmuls: columns ordered (kh, kw, cin).
    w1_mat = jnp.transpose(w1_oihw, (0, 2, 3, 1)).reshape(F, 9 * C)          # (F, 9C)
    w2_row = jnp.transpose(w2_oihw, (0, 2, 3, 1)).reshape(1, 9 * F)          # (1, 9F)
    w2_mat = jnp.pad(w2_row, ((0, 7), (0, 0)))                               # (8, 9F)

    return {
        'w1_oihw': w1_oihw, 'b1': b1, 'w2_oihw': w2_oihw, 'b2': b2,
        'w1_mat': w1_mat, 'w2_mat': w2_mat,
        'b1_col': b1.reshape(F, 1), 'b2_s': b2.reshape(1, 1),
    }


# ----------------------------- pure-JAX reference check -----------------------------

def adversarial_loss_reference(real, fake, params, fm_weight=10.0):
    def disc(x):
        y = lax.conv_general_dilated(x, params['w1_oihw'], (1, 1), 'SAME',
                                     dimension_numbers=('NCHW', 'OIHW', 'NCHW'))
        y = y + params['b1'].reshape(1, -1, 1, 1)
        y = jnp.where(y > 0, y, LRELU_SLOPE * y)
        y = lax.conv_general_dilated(y, params['w2_oihw'], (1, 1), 'SAME',
                                     dimension_numbers=('NCHW', 'OIHW', 'NCHW'))
        return y + params['b2'].reshape(1, -1, 1, 1)

    rp, fp = disc(real), disc(fake)
    real_loss = jnp.mean(jax.nn.relu(1.0 - rp))
    fake_loss = jnp.mean(jax.nn.relu(1.0 + fp))
    adv = 0.5 * (real_loss + fake_loss)
    fm = 0.0
    for r, f in zip(rp[:-1], fp[:-1]):
        fm = fm + jnp.mean(jnp.abs(r - f))
    return adv + fm_weight * fm


if __name__ == "__main__":
    key = jax.random.PRNGKey(0)
    B, C, H, W, F = 2, 4, 16, 16, 8
    kp, kr, kf = jax.random.split(key, 3)

    params = init_discriminator_params(kp, C, F)
    real = jax.random.normal(kr, (B, C, H, W), jnp.float32)
    fake = jax.random.normal(kf, (B, C, H, W), jnp.float32)

    loss_fn = jax.jit(lambda r, f, p: adversarial_loss_pallas(
        r, f, p, feature_matching_weight=10.0))
    loss = jax.block_until_ready(loss_fn(real, fake, params))

    ref = jax.block_until_ready(adversarial_loss_reference(real, fake, params, 10.0))
    # bf16 MXU operands (f32 accumulation) -> slightly looser tolerance than pure-f32.
    assert jnp.allclose(loss, ref, rtol=2e-3, atol=2e-3), (float(loss), float(ref))

    print("KERNEL_OK")
</pallas_src>

<mosaic_0001>
module attributes {stable_mosaic.version = 11 : i64} {
  func.func @_adv_loss_kernel(%arg0: i32, %arg1: memref<1x4x256xf32, #tpu.memory_space<vmem>>, %arg2: memref<1x4x256xf32, #tpu.memory_space<vmem>>, %arg3: memref<9x256xf32, #tpu.memory_space<vmem>>, %arg4: memref<8x36xf32, #tpu.memory_space<vmem>>, %arg5: memref<8x1xf32, #tpu.memory_space<vmem>>, %arg6: memref<8x72xf32, #tpu.memory_space<vmem>>, %arg7: memref<1x1xf32, #tpu.memory_space<smem>>, %arg8: memref<1x1x128xf32, #tpu.memory_space<vmem>>, %arg9: memref<1x1x128xf32, #tpu.memory_space<vmem>>) attributes {dimension_semantics = [#tpu.dimension_semantics<parallel>], iteration_bounds = array<i64: 2>, scalar_prefetch = 0 : i64, scratch_operands = 0 : i64, tpu.core_type = #tpu.core_type<tc>, window_params = [{transform_indices = @transform_0, window_bounds = array<i64: 1, 4, 256>}, {transform_indices = @transform_1, window_bounds = array<i64: 1, 4, 256>}, {pipeline_mode = #tpu.pipeline_mode<synchronous>, transform_indices = @transform_2, window_bounds = array<i64: 9, 256>}, {pipeline_mode = #tpu.pipeline_mode<synchronous>, transform_indices = @transform_3, window_bounds = array<i64: 8, 36>}, {pipeline_mode = #tpu.pipeline_mode<synchronous>, transform_indices = @transform_4, window_bounds = array<i64: 8, 1>}, {pipeline_mode = #tpu.pipeline_mode<synchronous>, transform_indices = @transform_5, window_bounds = array<i64: 8, 72>}, {transform_indices = @transform_6, window_bounds = array<i64: 1, 1>}, {transform_indices = @transform_7, window_bounds = array<i64: 1, 1, 128>}, {transform_indices = @transform_8, window_bounds = array<i64: 1, 1, 128>}]} {
    %c0 = arith.constant 0 : index
    %c0_0 = arith.constant 0 : index
    %0 = vector.load %arg3[%c0, %c0_0] : memref<9x256xf32, #tpu.memory_space<vmem>>, vector<9x256xf32>
    %c0_1 = arith.constant 0 : index
    %c0_2 = arith.constant 0 : index
    %1 = vector.load %arg4[%c0_1, %c0_2] : memref<8x36xf32, #tpu.memory_space<vmem>>, vector<8x36xf32>
    %2 = arith.truncf %1 : vector<8x36xf32> to vector<8x36xbf16>
    %c0_3 = arith.constant 0 : index
    %c0_4 = arith.constant 0 : index
    %3 = vector.load %arg6[%c0_3, %c0_4] : memref<8x72xf32, #tpu.memory_space<vmem>>, vector<8x72xf32>
    %4 = arith.truncf %3 : vector<8x72xf32> to vector<8x72xbf16>
    %c0_5 = arith.constant 0 : index
    %c0_6 = arith.constant 0 : index
    %5 = vector.load %arg5[%c0_5, %c0_6] : memref<8x1xf32, #tpu.memory_space<vmem>>, vector<8x1xf32>
    %c0_7 = arith.constant 0 : index
    %c0_8 = arith.constant 0 : index
    %6 = memref.load %arg7[%c0_7, %c0_8] : memref<1x1xf32, #tpu.memory_space<smem>>
    %c0_9 = arith.constant 0 : index
    %c0_10 = arith.constant 0 : index
    %c0_11 = arith.constant 0 : index
    %7 = vector.load %arg1[%c0_9, %c0_10, %c0_11] : memref<1x4x256xf32, #tpu.memory_space<vmem>>, vector<1x4x256xf32>
    %8 = vector.shape_cast %7 : vector<1x4x256xf32> to vector<4x256xf32>
    %c17_i32 = arith.constant 17 : i32
    %9 = tpu.dynamic_rotate %8 by %c17_i32 dim 1 : vector<4x256xf32>, i32 -> vector<4x256xf32>
    %10 = vector.extract_strided_slice %0 {offsets = [0, 0], sizes = [1, 256], strides = [1, 1]} : vector<9x256xf32> to vector<1x256xf32>
    %11 = vector.broadcast %10 : vector<1x256xf32> to vector<4x256xf32>
    %12 = arith.mulf %9, %11 : vector<4x256xf32>
    %c16_i32 = arith.constant 16 : i32
    %13 = tpu.dynamic_rotate %8 by %c16_i32 dim 1 : vector<4x256xf32>, i32 -> vector<4x256xf32>
    %14 = vector.extract_strided_slice %0 {offsets = [1, 0], sizes = [1, 256], strides = [1, 1]} : vector<9x256xf32> to vector<1x256xf32>
    %15 = vector.broadcast %14 : vector<1x256xf32> to vector<4x256xf32>
    %16 = arith.mulf %13, %15 : vector<4x256xf32>
    %c15_i32 = arith.constant 15 : i32
    %17 = tpu.dynamic_rotate %8 by %c15_i32 dim 1 : vector<4x256xf32>, i32 -> vector<4x256xf32>
    %18 = vector.extract_strided_slice %0 {offsets = [2, 0], sizes = [1, 256], strides = [1, 1]} : vector<9x256xf32> to vector<1x256xf32>
    %19 = vector.broadcast %18 : vector<1x256xf32> to vector<4x256xf32>
    %20 = arith.mulf %17, %19 : vector<4x256xf32>
    %c1_i32 = arith.constant 1 : i32
    %21 = tpu.dynamic_rotate %8 by %c1_i32 dim 1 : vector<4x256xf32>, i32 -> vector<4x256xf32>
    %22 = vector.extract_strided_slice %0 {offsets = [3, 0], sizes = [1, 256], strides = [1, 1]} : vector<9x256xf32> to vector<1x256xf32>
    %23 = vector.broadcast %22 : vector<1x256xf32> to vector<4x256xf32>
    %24 = arith.mulf %21, %23 : vector<4x256xf32>
    %c255_i32 = arith.constant 255 : i32
    %25 = tpu.dynamic_rotate %8 by %c255_i32 dim 1 : vector<4x256xf32>, i32 -> vector<4x256xf32>
    %26 = vector.extract_strided_slice %0 {offsets = [5, 0], sizes = [1, 256], strides = [1, 1]} : vector<9x256xf32> to vector<1x256xf32>
    %27 = vector.broadcast %26 : vector<1x256xf32> to vector<4x256xf32>
    %28 = arith.mulf %25, %27 : vector<4x256xf32>
    %c241_i32 = arith.constant 241 : i32
    %29 = tpu.dynamic_rotate %8 by %c241_i32 dim 1 : vector<4x256xf32>, i32 -> vector<4x256xf32>
    %30 = vector.extract_strided_slice %0 {offsets = [6, 0], sizes = [1, 256], strides = [1, 1]} : vector<9x256xf32> to vector<1x256xf32>
    %31 = vector.broadcast %30 : vector<1x256xf32> to vector<4x256xf32>
    %32 = arith.mulf %29, %31 : vector<4x256xf32>
    %c240_i32 = arith.constant 240 : i32
    %33 = tpu.dynamic_rotate %8 by %c240_i32 dim 1 : vector<4x256xf32>, i32 -> vector<4x256xf32>
    %34 = vector.extract_strided_slice %0 {offsets = [7, 0], sizes = [1, 256], strides = [1, 1]} : vector<9x256xf32> to vector<1x256xf32>
    %35 = vector.broadcast %34 : vector<1x256xf32> to vector<4x256xf32>
    %36 = arith.mulf %33, %35 : vector<4x256xf32>
    %c239_i32 = arith.constant 239 : i32
    %37 = tpu.dynamic_rotate %8 by %c239_i32 dim 1 : vector<4x256xf32>, i32 -> vector<4x256xf32>
    %38 = vector.extract_strided_slice %0 {offsets = [8, 0], sizes = [1, 256], strides = [1, 1]} : vector<9x256xf32> to vector<1x256xf32>
    %39 = vector.broadcast %38 : vector<1x256xf32> to vector<4x256xf32>
    %40 = arith.mulf %37, %39 : vector<4x256xf32>
    %41 = tpu.concatenate %12, %16, %20, %24, %8, %28, %32, %36, %40 in 0 : vector<4x256xf32>, vector<4x256xf32>, vector<4x256xf32>, vector<4x256xf32>, vector<4x256xf32>, vector<4x256xf32>, vector<4x256xf32>, vector<4x256xf32>, vector<4x256xf32> -> vector<36x256xf32>
    %42 = arith.truncf %41 : vector<36x256xf32> to vector<36x256xbf16>
    %cst = arith.constant dense<0.000000e+00> : vector<8x256xf32>
    %43 = tpu.matmul %2, %42, %cst {dimension_numbers = #tpu.dot_dimension_numbers<[1], [0], [0], [1], [0, 0, 1, 1], [], []>} : vector<8x36xbf16>, vector<36x256xbf16>, vector<8x256xf32> -> vector<8x256xf32>
    %44 = vector.broadcast %5 : vector<8x1xf32> to vector<8x256xf32>
    %45 = arith.addf %43, %44 : vector<8x256xf32>
    %cst_12 = arith.constant 0.000000e+00 : f32
    %46 = vector.broadcast %cst_12 : f32 to vector<8x256xf32>
    %47 = arith.cmpf ogt, %45, %46 : vector<8x256xf32>
    %cst_13 = arith.constant 2.000000e-01 : f32
    %48 = vector.broadcast %cst_13 : f32 to vector<8x256xf32>
    %49 = arith.mulf %48, %45 : vector<8x256xf32>
    %50 = arith.select %47, %45, %49 : vector<8x256xi1>, vector<8x256xf32>
    %c17_i32_14 = arith.constant 17 : i32
    %51 = tpu.dynamic_rotate %50 by %c17_i32_14 dim 1 : vector<8x256xf32>, i32 -> vector<8x256xf32>
    %52 = vector.extract_strided_slice %0 {offsets = [0, 0], sizes = [1, 256], strides = [1, 1]} : vector<9x256xf32> to vector<1x256xf32>
    %53 = vector.broadcast %52 : vector<1x256xf32> to vector<8x256xf32>
    %54 = arith.mulf %51, %53 : vector<8x256xf32>
    %c16_i32_15 = arith.constant 16 : i32
    %55 = tpu.dynamic_rotate %50 by %c16_i32_15 dim 1 : vector<8x256xf32>, i32 -> vector<8x256xf32>
    %56 = vector.extract_strided_slice %0 {offsets = [1, 0], sizes = [1, 256], strides = [1, 1]} : vector<9x256xf32> to vector<1x256xf32>
    %57 = vector.broadcast %56 : vector<1x256xf32> to vector<8x256xf32>
    %58 = arith.mulf %55, %57 : vector<8x256xf32>
    %c15_i32_16 = arith.constant 15 : i32
    %59 = tpu.dynamic_rotate %50 by %c15_i32_16 dim 1 : vector<8x256xf32>, i32 -> vector<8x256xf32>
    %60 = vector.extract_strided_slice %0 {offsets = [2, 0], sizes = [1, 256], strides = [1, 1]} : vector<9x256xf32> to vector<1x256xf32>
    %61 = vector.broadcast %60 : vector<1x256xf32> to vector<8x256xf32>
    %62 = arith.mulf %59, %61 : vector<8x256xf32>
    %c1_i32_17 = arith.constant 1 : i32
    %63 = tpu.dynamic_rotate %50 by %c1_i32_17 dim 1 : vector<8x256xf32>, i32 -> vector<8x256xf32>
    %64 = vector.extract_strided_slice %0 {offsets = [3, 0], sizes = [1, 256], strides = [1, 1]} : vector<9x256xf32> to vector<1x256xf32>
    %65 = vector.broadcast %64 : vector<1x256xf32> to vector<8x256xf32>
    %66 = arith.mulf %63, %65 : vector<8x256xf32>
    %c255_i32_18 = arith.constant 255 : i32
    %67 = tpu.dynamic_rotate %50 by %c255_i32_18 dim 1 : vector<8x256xf32>, i32 -> vector<8x256xf32>
    %68 = vector.extract_strided_slice %0 {offsets = [5, 0], sizes = [1, 256], strides = [1, 1]} : vector<9x256xf32> to vector<1x256xf32>
    %69 = vector.broadcast %68 : vector<1x256xf32> to vector<8x256xf32>
    %70 = arith.mulf %67, %69 : vector<8x256xf32>
    %c241_i32_19 = arith.constant 241 : i32
    %71 = tpu.dynamic_rotate %50 by %c241_i32_19 dim 1 : vector<8x256xf32>, i32 -> vector<8x256xf32>
    %72 = vector.extract_strided_slice %0 {offsets = [6, 0], sizes = [1, 256], strides = [1, 1]} : vector<9x256xf32> to vector<1x256xf32>
    %73 = vector.broadcast %72 : vector<1x256xf32> to vector<8x256xf32>
    %74 = arith.mulf %71, %73 : vector<8x256xf32>
    %c240_i32_20 = arith.constant 240 : i32
    %75 = tpu.dynamic_rotate %50 by %c240_i32_20 dim 1 : vector<8x256xf32>, i32 -> vector<8x256xf32>
    %76 = vector.extract_strided_slice %0 {offsets = [7, 0], sizes = [1, 256], strides = [1, 1]} : vector<9x256xf32> to vector<1x256xf32>
    %77 = vector.broadcast %76 : vector<1x256xf32> to vector<8x256xf32>
    %78 = arith.mulf %75, %77 : vector<8x256xf32>
    %c239_i32_21 = arith.constant 239 : i32
    %79 = tpu.dynamic_rotate %50 by %c239_i32_21 dim 1 : vector<8x256xf32>, i32 -> vector<8x256xf32>
    %80 = vector.extract_strided_slice %0 {offsets = [8, 0], sizes = [1, 256], strides = [1, 1]} : vector<9x256xf32> to vector<1x256xf32>
    %81 = vector.broadcast %80 : vector<1x256xf32> to vector<8x256xf32>
    %82 = arith.mulf %79, %81 : vector<8x256xf32>
    %83 = tpu.concatenate %54, %58, %62, %66, %50, %70, %74, %78, %82 in 0 : vector<8x256xf32>, vector<8x256xf32>, vector<8x256xf32>, vector<8x256xf32>, vector<8x256xf32>, vector<8x256xf32>, vector<8x256xf32>, vector<8x256xf32>, vector<8x256xf32> -> vector<72x256xf32>
    %84 = arith.truncf %83 : vector<72x256xf32> to vector<72x256xbf16>
    %cst_22 = arith.constant dense<0.000000e+00> : vector<8x256xf32>
    %85 = tpu.matmul %4, %84, %cst_22 {dimension_numbers = #tpu.dot_dimension_numbers<[1], [0], [0], [1], [0, 0, 1, 1], [], []>} : vector<8x72xbf16>, vector<72x256xbf16>, vector<8x256xf32> -> vector<8x256xf32>
    %86 = vector.extract_strided_slice %85 {offsets = [0, 0], sizes = [1, 256], strides = [1, 1]} : vector<8x256xf32> to vector<1x256xf32>
    %87 = vector.broadcast %6 : f32 to vector<1x256xf32>
    %88 = arith.addf %86, %87 : vector<1x256xf32>
    %c0_23 = arith.constant 0 : index
    %c0_24 = arith.constant 0 : index
    %c0_25 = arith.constant 0 : index
    %89 = vector.load %arg2[%c0_23, %c0_24, %c0_25] : memref<1x4x256xf32, #tpu.memory_space<vmem>>, vector<1x4x256xf32>
    %90 = vector.shape_cast %89 : vector<1x4x256xf32> to vector<4x256xf32>
    %c17_i32_26 = arith.constant 17 : i32
    %91 = tpu.dynamic_rotate %90 by %c17_i32_26 dim 1 : vector<4x256xf32>, i32 -> vector<4x256xf32>
    %92 = vector.extract_strided_slice %0 {offsets = [0, 0], sizes = [1, 256], strides = [1, 1]} : vector<9x256xf32> to vector<1x256xf32>
    %93 = vector.broadcast %92 : vector<1x256xf32> to vector<4x256xf32>
    %94 = arith.mulf %91, %93 : vector<4x256xf32>
    %c16_i32_27 = arith.constant 16 : i32
    %95 = tpu.dynamic_rotate %90 by %c16_i32_27 dim 1 : vector<4x256xf32>, i32 -> vector<4x256xf32>
    %96 = vector.extract_strided_slice %0 {offsets = [1, 0], sizes = [1, 256], strides = [1, 1]} : vector<9x256xf32> to vector<1x256xf32>
    %97 = vector.broadcast %96 : vector<1x256xf32> to vector<4x256xf32>
    %98 = arith.mulf %95, %97 : vector<4x256xf32>
    %c15_i32_28 = arith.constant 15 : i32
    %99 = tpu.dynamic_rotate %90 by %c15_i32_28 dim 1 : vector<4x256xf32>, i32 -> vector<4x256xf32>
    %100 = vector.extract_strided_slice %0 {offsets = [2, 0], sizes = [1, 256], strides = [1, 1]} : vector<9x256xf32> to vector<1x256xf32>
    %101 = vector.broadcast %100 : vector<1x256xf32> to vector<4x256xf32>
    %102 = arith.mulf %99, %101 : vector<4x256xf32>
    %c1_i32_29 = arith.constant 1 : i32
    %103 = tpu.dynamic_rotate %90 by %c1_i32_29 dim 1 : vector<4x256xf32>, i32 -> vector<4x256xf32>
    %104 = vector.extract_strided_slice %0 {offsets = [3, 0], sizes = [1, 256], strides = [1, 1]} : vector<9x256xf32> to vector<1x256xf32>
    %105 = vector.broadcast %104 : vector<1x256xf32> to vector<4x256xf32>
    %106 = arith.mulf %103, %105 : vector<4x256xf32>
    %c255_i32_30 = arith.constant 255 : i32
    %107 = tpu.dynamic_rotate %90 by %c255_i32_30 dim 1 : vector<4x256xf32>, i32 -> vector<4x256xf32>
    %108 = vector.extract_strided_slice %0 {offsets = [5, 0], sizes = [1, 256], strides = [1, 1]} : vector<9x256xf32> to vector<1x256xf32>
    %109 = vector.broadcast %108 : vector<1x256xf32> to vector<4x256xf32>
    %110 = arith.mulf %107, %109 : vector<4x256xf32>
    %c241_i32_31 = arith.constant 241 : i32
    %111 = tpu.dynamic_rotate %90 by %c241_i32_31 dim 1 : vector<4x256xf32>, i32 -> vector<4x256xf32>
    %112 = vector.extract_strided_slice %0 {offsets = [6, 0], sizes = [1, 256], strides = [1, 1]} : vector<9x256xf32> to vector<1x256xf32>
    %113 = vector.broadcast %112 : vector<1x256xf32> to vector<4x256xf32>
    %114 = arith.mulf %111, %113 : vector<4x256xf32>
    %c240_i32_32 = arith.constant 240 : i32
    %115 = tpu.dynamic_rotate %90 by %c240_i32_32 dim 1 : vector<4x256xf32>, i32 -> vector<4x256xf32>
    %116 = vector.extract_strided_slice %0 {offsets = [7, 0], sizes = [1, 256], strides = [1, 1]} : vector<9x256xf32> to vector<1x256xf32>
    %117 = vector.broadcast %116 : vector<1x256xf32> to vector<4x256xf32>
    %118 = arith.mulf %115, %117 : vector<4x256xf32>
    %c239_i32_33 = arith.constant 239 : i32
    %119 = tpu.dynamic_rotate %90 by %c239_i32_33 dim 1 : vector<4x256xf32>, i32 -> vector<4x256xf32>
    %120 = vector.extract_strided_slice %0 {offsets = [8, 0], sizes = [1, 256], strides = [1, 1]} : vector<9x256xf32> to vector<1x256xf32>
    %121 = vector.broadcast %120 : vector<1x256xf32> to vector<4x256xf32>
    %122 = arith.mulf %119, %121 : vector<4x256xf32>
    %123 = tpu.concatenate %94, %98, %102, %106, %90, %110, %114, %118, %122 in 0 : vector<4x256xf32>, vector<4x256xf32>, vector<4x256xf32>, vector<4x256xf32>, vector<4x256xf32>, vector<4x256xf32>, vector<4x256xf32>, vector<4x256xf32>, vector<4x256xf32> -> vector<36x256xf32>
    %124 = arith.truncf %123 : vector<36x256xf32> to vector<36x256xbf16>
    %cst_34 = arith.constant dense<0.000000e+00> : vector<8x256xf32>
    %125 = tpu.matmul %2, %124, %cst_34 {dimension_numbers = #tpu.dot_dimension_numbers<[1], [0], [0], [1], [0, 0, 1, 1], [], []>} : vector<8x36xbf16>, vector<36x256xbf16>, vector<8x256xf32> -> vector<8x256xf32>
    %126 = vector.broadcast %5 : vector<8x1xf32> to vector<8x256xf32>
    %127 = arith.addf %125, %126 : vector<8x256xf32>
    %cst_35 = arith.constant 0.000000e+00 : f32
    %128 = vector.broadcast %cst_35 : f32 to vector<8x256xf32>
    %129 = arith.cmpf ogt, %127, %128 : vector<8x256xf32>
    %cst_36 = arith.constant 2.000000e-01 : f32
    %130 = vector.broadcast %cst_36 : f32 to vector<8x256xf32>
    %131 = arith.mulf %130, %127 : vector<8x256xf32>
    %132 = arith.select %129, %127, %131 : vector<8x256xi1>, vector<8x256xf32>
    %c17_i32_37 = arith.constant 17 : i32
    %133 = tpu.dynamic_rotate %132 by %c17_i32_37 dim 1 : vector<8x256xf32>, i32 -> vector<8x256xf32>
    %134 = vector.extract_strided_slice %0 {offsets = [0, 0], sizes = [1, 256], strides = [1, 1]} : vector<9x256xf32> to vector<1x256xf32>
    %135 = vector.broadcast %134 : vector<1x256xf32> to vector<8x256xf32>
    %136 = arith.mulf %133, %135 : vector<8x256xf32>
    %c16_i32_38 = arith.constant 16 : i32
    %137 = tpu.dynamic_rotate %132 by %c16_i32_38 dim 1 : vector<8x256xf32>, i32 -> vector<8x256xf32>
    %138 = vector.extract_strided_slice %0 {offsets = [1, 0], sizes = [1, 256], strides = [1, 1]} : vector<9x256xf32> to vector<1x256xf32>
    %139 = vector.broadcast %138 : vector<1x256xf32> to vector<8x256xf32>
    %140 = arith.mulf %137, %139 : vector<8x256xf32>
    %c15_i32_39 = arith.constant 15 : i32
    %141 = tpu.dynamic_rotate %132 by %c15_i32_39 dim 1 : vector<8x256xf32>, i32 -> vector<8x256xf32>
    %142 = vector.extract_strided_slice %0 {offsets = [2, 0], sizes = [1, 256], strides = [1, 1]} : vector<9x256xf32> to vector<1x256xf32>
    %143 = vector.broadcast %142 : vector<1x256xf32> to vector<8x256xf32>
    %144 = arith.mulf %141, %143 : vector<8x256xf32>
    %c1_i32_40 = arith.constant 1 : i32
    %145 = tpu.dynamic_rotate %132 by %c1_i32_40 dim 1 : vector<8x256xf32>, i32 -> vector<8x256xf32>
    %146 = vector.extract_strided_slice %0 {offsets = [3, 0], sizes = [1, 256], strides = [1, 1]} : vector<9x256xf32> to vector<1x256xf32>
    %147 = vector.broadcast %146 : vector<1x256xf32> to vector<8x256xf32>
    %148 = arith.mulf %145, %147 : vector<8x256xf32>
    %c255_i32_41 = arith.constant 255 : i32
    %149 = tpu.dynamic_rotate %132 by %c255_i32_41 dim 1 : vector<8x256xf32>, i32 -> vector<8x256xf32>
    %150 = vector.extract_strided_slice %0 {offsets = [5, 0], sizes = [1, 256], strides = [1, 1]} : vector<9x256xf32> to vector<1x256xf32>
    %151 = vector.broadcast %150 : vector<1x256xf32> to vector<8x256xf32>
    %152 = arith.mulf %149, %151 : vector<8x256xf32>
    %c241_i32_42 = arith.constant 241 : i32
    %153 = tpu.dynamic_rotate %132 by %c241_i32_42 dim 1 : vector<8x256xf32>, i32 -> vector<8x256xf32>
    %154 = vector.extract_strided_slice %0 {offsets = [6, 0], sizes = [1, 256], strides = [1, 1]} : vector<9x256xf32> to vector<1x256xf32>
    %155 = vector.broadcast %154 : vector<1x256xf32> to vector<8x256xf32>
    %156 = arith.mulf %153, %155 : vector<8x256xf32>
    %c240_i32_43 = arith.constant 240 : i32
    %157 = tpu.dynamic_rotate %132 by %c240_i32_43 dim 1 : vector<8x256xf32>, i32 -> vector<8x256xf32>
    %158 = vector.extract_strided_slice %0 {offsets = [7, 0], sizes = [1, 256], strides = [1, 1]} : vector<9x256xf32> to vector<1x256xf32>
    %159 = vector.broadcast %158 : vector<1x256xf32> to vector<8x256xf32>
    %160 = arith.mulf %157, %159 : vector<8x256xf32>
    %c239_i32_44 = arith.constant 239 : i32
    %161 = tpu.dynamic_rotate %132 by %c239_i32_44 dim 1 : vector<8x256xf32>, i32 -> vector<8x256xf32>
    %162 = vector.extract_strided_slice %0 {offsets = [8, 0], sizes = [1, 256], strides = [1, 1]} : vector<9x256xf32> to vector<1x256xf32>
    %163 = vector.broadcast %162 : vector<1x256xf32> to vector<8x256xf32>
    %164 = arith.mulf %161, %163 : vector<8x256xf32>
    %165 = tpu.concatenate %136, %140, %144, %148, %132, %152, %156, %160, %164 in 0 : vector<8x256xf32>, vector<8x256xf32>, vector<8x256xf32>, vector<8x256xf32>, vector<8x256xf32>, vector<8x256xf32>, vector<8x256xf32>, vector<8x256xf32>, vector<8x256xf32> -> vector<72x256xf32>
    %166 = arith.truncf %165 : vector<72x256xf32> to vector<72x256xbf16>
    %cst_45 = arith.constant dense<0.000000e+00> : vector<8x256xf32>
    %167 = tpu.matmul %4, %166, %cst_45 {dimension_numbers = #tpu.dot_dimension_numbers<[1], [0], [0], [1], [0, 0, 1, 1], [], []>} : vector<8x72xbf16>, vector<72x256xbf16>, vector<8x256xf32> -> vector<8x256xf32>
    %168 = vector.extract_strided_slice %167 {offsets = [0, 0], sizes = [1, 256], strides = [1, 1]} : vector<8x256xf32> to vector<1x256xf32>
    %169 = vector.broadcast %6 : f32 to vector<1x256xf32>
    %170 = arith.addf %168, %169 : vector<1x256xf32>
    %cst_46 = arith.constant 1.000000e+00 : f32
    %171 = vector.broadcast %cst_46 : f32 to vector<1x256xf32>
    %172 = arith.subf %171, %88 : vector<1x256xf32>
    %cst_47 = arith.constant 0.000000e+00 : f32
    %173 = vector.broadcast %cst_47 : f32 to vector<1x256xf32>
    %174 = arith.maximumf %172, %173 : vector<1x256xf32>
    %175 = vector.shape_cast %174 : vector<1x256xf32> to vector<1x1x256xf32>
    %cst_48 = arith.constant dense<0.000000e+00> : vector<1xf32>
    %176 = vector.multi_reduction <add>, %175, %cst_48 [1, 2] : vector<1x1x256xf32> to vector<1xf32>
    %177 = vector.shape_cast %176 : vector<1xf32> to vector<1x1x1xf32>
    %178 = vector.extract %177[0, 0, 0] : f32 from vector<1x1x1xf32>
    %cst_49 = arith.constant 1.000000e+00 : f32
    %179 = vector.broadcast %cst_49 : f32 to vector<1x256xf32>
    %180 = arith.addf %179, %170 : vector<1x256xf32>
    %cst_50 = arith.constant 0.000000e+00 : f32
    %181 = vector.broadcast %cst_50 : f32 to vector<1x256xf32>
    %182 = arith.maximumf %180, %181 : vector<1x256xf32>
    %183 = vector.shape_cast %182 : vector<1x256xf32> to vector<1x1x256xf32>
    %cst_51 = arith.constant dense<0.000000e+00> : vector<1xf32>
    %184 = vector.multi_reduction <add>, %183, %cst_51 [1, 2] : vector<1x1x256xf32> to vector<1xf32>
    %185 = vector.shape_cast %184 : vector<1xf32> to vector<1x1x1xf32>
    %186 = vector.extract %185[0, 0, 0] : f32 from vector<1x1x1xf32>
    %187 = arith.addf %178, %186 : f32
    %188 = vector.broadcast %187 : f32 to vector<1x1x128xf32>
    %c0_52 = arith.constant 0 : index
    %c0_53 = arith.constant 0 : index
    %c0_54 = arith.constant 0 : index
    %189 = vector.load %arg8[%c0_52, %c0_53, %c0_54] : memref<1x1x128xf32, #tpu.memory_space<vmem>>, vector<1x1x128xf32>
    tpu.vector_store %arg8[%c0_52, %c0_53, %c0_54], %188 {strides = array<i32>} : memref<1x1x128xf32, #tpu.memory_space<vmem>>, vector<1x1x128xf32>,
    %c1_i32_55 = arith.constant 1 : i32
    %190 = arith.cmpi slt, %arg0, %c1_i32_55 : i32
    %191 = arith.subf %88, %170 : vector<1x256xf32>
    %192 = math.absf %191 : vector<1x256xf32>
    %193 = vector.shape_cast %192 : vector<1x256xf32> to vector<1x1x256xf32>
    %cst_56 = arith.constant dense<0.000000e+00> : vector<1xf32>
    %194 = vector.multi_reduction <add>, %193, %cst_56 [1, 2] : vector<1x1x256xf32> to vector<1xf32>
    %195 = vector.shape_cast %194 : vector<1xf32> to vector<1x1x1xf32>
    %196 = vector.extract %195[0, 0, 0] : f32 from vector<1x1x1xf32>
    %cst_57 = arith.constant 0.000000e+00 : f32
    %197 = arith.select %190, %196, %cst_57 : f32
    %198 = vector.broadcast %197 : f32 to vector<1x1x128xf32>
    %c0_58 = arith.constant 0 : index
    %c0_59 = arith.constant 0 : index
    %c0_60 = arith.constant 0 : index
    %199 = vector.load %arg9[%c0_58, %c0_59, %c0_60] : memref<1x1x128xf32, #tpu.memory_space<vmem>>, vector<1x1x128xf32>
    tpu.vector_store %arg9[%c0_58, %c0_59, %c0_60], %198 {strides = array<i32>} : memref<1x1x128xf32, #tpu.memory_space<vmem>>, vector<1x1x128xf32>,
    return
  }
  func.func @transform_0(%arg0: i32) -> (i32, i32, i32) {
    %c0_i32 = arith.constant 0 : i32
    %c0_i32_0 = arith.constant 0 : i32
    %c0_i32_1 = arith.constant 0 : i32
    return %arg0, %c0_i32, %c0_i32_0 : i32, i32, i32
  }
  func.func @transform_1(%arg0: i32) -> (i32, i32, i32) {
    %c0_i32 = arith.constant 0 : i32
    %c0_i32_0 = arith.constant 0 : i32
    %c0_i32_1 = arith.constant 0 : i32
    return %arg0, %c0_i32, %c0_i32_0 : i32, i32, i32
  }
  func.func @transform_2(%arg0: i32) -> (i32, i32) {
    %c0_i32 = arith.constant 0 : i32
    %c0_i32_0 = arith.constant 0 : i32
    %c0_i32_1 = arith.constant 0 : i32
    return %c0_i32, %c0_i32_0 : i32, i32
  }
  func.func @transform_3(%arg0: i32) -> (i32, i32) {
    %c0_i32 = arith.constant 0 : i32
    %c0_i32_0 = arith.constant 0 : i32
    %c0_i32_1 = arith.constant 0 : i32
    return %c0_i32, %c0_i32_0 : i32, i32
  }
  func.func @transform_4(%arg0: i32) -> (i32, i32) {
    %c0_i32 = arith.constant 0 : i32
    %c0_i32_0 = arith.constant 0 : i32
    %c0_i32_1 = arith.constant 0 : i32
    return %c0_i32, %c0_i32_0 : i32, i32
  }
  func.func @transform_5(%arg0: i32) -> (i32, i32) {
    %c0_i32 = arith.constant 0 : i32
    %c0_i32_0 = arith.constant 0 : i32
    %c0_i32_1 = arith.constant 0 : i32
    return %c0_i32, %c0_i32_0 : i32, i32
  }
  func.func @transform_6(%arg0: i32) -> (i32, i32) {
    %c0_i32 = arith.constant 0 : i32
    %c0_i32_0 = arith.constant 0 : i32
    %c0_i32_1 = arith.constant 0 : i32
    return %c0_i32, %c0_i32_0 : i32, i32
  }
  func.func @transform_7(%arg0: i32) -> (i32, i32, i32) {
    %c0_i32 = arith.constant 0 : i32
    %c0_i32_0 = arith.constant 0 : i32
    %c0_i32_1 = arith.constant 0 : i32
    return %arg0, %c0_i32, %c0_i32_0 : i32, i32, i32
  }
  func.func @transform_8(%arg0: i32) -> (i32, i32, i32) {
    %c0_i32 = arith.constant 0 : i32
    %c0_i32_0 = arith.constant 0 : i32
    %c0_i32_1 = arith.constant 0 : i32
    return %arg0, %c0_i32, %c0_i32_0 : i32, i32, i32
  }
}

</mosaic_0001>

<llo_original>
// kernel: _lambda_.1
$region0: #{_lambda_.1}
  #allocation0 [shape = 'u32[]', space=smem, size = 0x4, offset = 0x4, fixed_abs, tag = 'smem constant byte address 0x4 - core index']
  #allocation1 [shape = 'u32[144,128]{1,0:T(1,128)}', space=vmem, size = 0x12000, scoped, tag = 'internal scratch']
  #allocation2 [shape = 'f32[1,1]{1,0:T(1,128)S(6)}', space=smem, size = 0x200, scoped, tag = 'scoped memory for _lambda_.1']
  %s0 = inlined_call_operand.vmem [shape: f32[2,4,256], index: 0, kind: input, shape index: {}]
  %s1 = inlined_call_operand.vmem [shape: f32[2,4,256], index: 1, kind: input, shape index: {}]
  %s2 = inlined_call_operand.vmem [shape: f32[9,256], index: 2, kind: input, shape index: {}]
  %s3 = inlined_call_operand.vmem [shape: f32[8,36], index: 3, kind: input, shape index: {}]
  %s4 = inlined_call_operand.vmem [shape: f32[8,1], index: 4, kind: input, shape index: {}]
  %s5 = inlined_call_operand.vmem [shape: f32[8,72], index: 5, kind: input, shape index: {}]
  %s6 = inlined_call_operand.<no memory space> [shape: f32[1,1], index: 6, kind: input, shape index: {}]
  %s7 = inlined_call_operand.vmem [shape: f32[2,1,128], index: 7, kind: output, shape index: {0}]
  %s8 = inlined_call_operand.vmem [shape: f32[2,1,128], index: 8, kind: output, shape index: {1}]
  %9 = xla_tuple %s7, %s8
  %s10 = sld [smem:[#allocation0]]
  $region69: #{_lambda_.1} parent=0
    _
  %s12 = ssub.s32 1, %s10
  %s13 = scalar_select 0, %s12, %s10
  %14 = sst [smem:[#allocation2]] %s6
  loop: start=0, step=1, limit=4
  $region2: #{_lambda_.1} parent=0 // loop_pre_header
    _
  $region3: #{_lambda_.1} parent=0 // loop_header
    %s16 = sphi 0, %s20
    %p17 = scmp.ge.s32.totalorder %s16, 4
    %s26 = sphi 0, %s28
    %s29 = sphi 0, %s26
    %s30 = sphi 0, %s29
    %s46 = sphi 0, %s30
    %s52 = sphi 0, %s54
    %s55 = sphi 0, %s52
    %s56 = sphi 0, %s55
    %s72 = sphi 0, %s56
    %s76 = sphi 0, %s76
    %s78 = sphi 0, %s76
    %s79 = sphi 0, %s78
    %s93 = sphi 0, %s79
    %s97 = sphi 0, %s97
    %s99 = sphi 0, %s97
    %s100 = sphi 0, %s99
    %s114 = sphi 0, %s100
    %s118 = sphi 0, %s118
    %s120 = sphi 0, %s118
    %s121 = sphi 0, %s120
    %s135 = sphi 0, %s121
    %s139 = sphi 0, %s139
    %s141 = sphi 0, %s139
    %s142 = sphi 0, %s141
    %s156 = sphi 0, %s142
    %s160 = sphi 0, %s160
    %s162 = sphi 0, %s160
    %s163 = sphi 0, %s162
    %s177 = sphi 0, %s163
    %s183 = sphi 0, %s185
    %s186 = sphi 0, %s183
    %s187 = sphi 0, %s186
    %s203 = sphi 0, %s187
    %s209 = sphi 0, %s211
    %s212 = sphi 0, %s209
    %s213 = sphi 0, %s212
    %s229 = sphi 0, %s213
  $region4: #{_lambda_.1} parent=0 // loop_header_branch
    %19 = sbr.rel (%p17) target = $region8
  $region5: #{_lambda_.1} parent=0 // loop_body
    %s21 = ssub.s32 %s16, 1
    %s22 = ssub.s32 %s16, 2
    %s23 = sadd.s32 %s16, 1
    %s24 = ssub.s32 %s16, %s23
    %p25 = scmp.eq.s32.totalorder %s24, 0
    %s27 = sadd.s32 %s26, 1
    %s28 = scalar_select %p25, %s26, %s27
    %p31 = pneg %p25
    %p32 = scmp.eq.s32.totalorder %s16, 1
    %p33 = por %p31, %p32
    %p34 = scmp.ne.s32.totalorder %s26, %s29
    %p35 = scmp.eq.s32.totalorder %s16, 0
    %p36 = por %p34, %p35
    %p37 = scmp.ne.s32.totalorder %s26, %s29
    %p38 = scmp.eq.s32.totalorder %s21, 1
    %p39 = por %p37, %p38
    %p40 = scmp.ne.s32.totalorder %s29, %s30
    %p41 = scmp.eq.s32.totalorder %s21, 0
    %p42 = por %p40, %p41
    %p43 = scmp.ne.s32.totalorder %s29, %s30
    %p44 = scmp.eq.s32.totalorder %s22, 1
    %p45 = por %p43, %p44
    %p47 = scmp.ne.s32.totalorder %s30, %s46
    %p48 = scmp.eq.s32.totalorder %s22, 0
    %p49 = por %p47, %p48
    %s50 = ssub.s32 %s16, %s23
    %p51 = scmp.eq.s32.totalorder %s50, 0
    %s53 = sadd.s32 %s52, 1
    %s54 = scalar_select %p51, %s52, %s53
    %p57 = pneg %p51
    %p58 = scmp.eq.s32.totalorder %s16, 1
    %p59 = por %p57, %p58
    %p60 = scmp.ne.s32.totalorder %s52, %s55
    %p61 = scmp.eq.s32.totalorder %s16, 0
    %p62 = por %p60, %p61
    %p63 = scmp.ne.s32.totalorder %s52, %s55
    %p64 = scmp.eq.s32.totalorder %s21, 1
    %p65 = por %p63, %p64
    %p66 = scmp.ne.s32.totalorder %s55, %s56
    %p67 = scmp.eq.s32.totalorder %s21, 0
    %p68 = por %p66, %p67
    %p69 = scmp.ne.s32.totalorder %s55, %s56
    %p70 = scmp.eq.s32.totalorder %s22, 1
    %p71 = por %p69, %p70
    %p73 = scmp.ne.s32.totalorder %s56, %s72
    %p74 = scmp.eq.s32.totalorder %s22, 0
    %p75 = por %p73, %p74
    %s77 = sadd.s32 %s76, 1
    %p80 = scmp.eq.s32.totalorder %s16, 1
    %p81 = scmp.ne.s32.totalorder %s76, %s78
    %p82 = scmp.eq.s32.totalorder %s16, 0
    %p83 = por %p81, %p82
    %p84 = scmp.ne.s32.totalorder %s76, %s78
    %p85 = scmp.eq.s32.totalorder %s21, 1
    %p86 = por %p84, %p85
    %p87 = scmp.ne.s32.totalorder %s78, %s79
    %p88 = scmp.eq.s32.totalorder %s21, 0
    %p89 = por %p87, %p88
    %p90 = scmp.ne.s32.totalorder %s78, %s79
    %p91 = scmp.eq.s32.totalorder %s22, 1
    %p92 = por %p90, %p91
    %p94 = scmp.ne.s32.totalorder %s79, %s93
    %p95 = scmp.eq.s32.totalorder %s22, 0
    %p96 = por %p94, %p95
    %s98 = sadd.s32 %s97, 1
    %p101 = scmp.eq.s32.totalorder %s16, 1
    %p102 = scmp.ne.s32.totalorder %s97, %s99
    %p103 = scmp.eq.s32.totalorder %s16, 0
    %p104 = por %p102, %p103
    %p105 = scmp.ne.s32.totalorder %s97, %s99
    %p106 = scmp.eq.s32.totalorder %s21, 1
    %p107 = por %p105, %p106
    %p108 = scmp.ne.s32.totalorder %s99, %s100
    %p109 = scmp.eq.s32.totalorder %s21, 0
    %p110 = por %p108, %p109
    %p111 = scmp.ne.s32.totalorder %s99, %s100
    %p112 = scmp.eq.s32.totalorder %s22, 1
    %p113 = por %p111, %p112
    %p115 = scmp.ne.s32.totalorder %s100, %s114
    %p116 = scmp.eq.s32.totalorder %s22, 0
    %p117 = por %p115, %p116
    %s119 = sadd.s32 %s118, 1
    %p122 = scmp.eq.s32.totalorder %s16, 1
    %p123 = scmp.ne.s32.totalorder %s118, %s120
    %p124 = scmp.eq.s32.totalorder %s16, 0
    %p125 = por %p123, %p124
    %p126 = scmp.ne.s32.totalorder %s118, %s120
    %p127 = scmp.eq.s32.totalorder %s21, 1
    %p128 = por %p126, %p127
    %p129 = scmp.ne.s32.totalorder %s120, %s121
    %p130 = scmp.eq.s32.totalorder %s21, 0
    %p131 = por %p129, %p130
    %p132 = scmp.ne.s32.totalorder %s120, %s121
    %p133 = scmp.eq.s32.totalorder %s22, 1
    %p134 = por %p132, %p133
    %p136 = scmp.ne.s32.totalorder %s121, %s135
    %p137 = scmp.eq.s32.totalorder %s22, 0
    %p138 = por %p136, %p137
    %s140 = sadd.s32 %s139, 1
    %p143 = scmp.eq.s32.totalorder %s16, 1
    %p144 = scmp.ne.s32.totalorder %s139, %s141
    %p145 = scmp.eq.s32.totalorder %s16, 0
    %p146 = por %p144, %p145
    %p147 = scmp.ne.s32.totalorder %s139, %s141
    %p148 = scmp.eq.s32.totalorder %s21, 1
    %p149 = por %p147, %p148
    %p150 = scmp.ne.s32.totalorder %s141, %s142
    %p151 = scmp.eq.s32.totalorder %s21, 0
    %p152 = por %p150, %p151
    %p153 = scmp.ne.s32.totalorder %s141, %s142
    %p154 = scmp.eq.s32.totalorder %s22, 1
    %p155 = por %p153, %p154
    %p157 = scmp.ne.s32.totalorder %s142, %s156
    %p158 = scmp.eq.s32.totalorder %s22, 0
    %p159 = por %p157, %p158
    %s161 = sadd.s32 %s160, 1
    %p164 = scmp.eq.s32.totalorder %s16, 1
    %p165 = scmp.ne.s32.totalorder %s160, %s162
    %p166 = scmp.eq.s32.totalorder %s16, 0
    %p167 = por %p165, %p166
    %p168 = scmp.ne.s32.totalorder %s160, %s162
    %p169 = scmp.eq.s32.totalorder %s21, 1
    %p170 = por %p168, %p169
    %p171 = scmp.ne.s32.totalorder %s162, %s163
    %p172 = scmp.eq.s32.totalorder %s21, 0
    %p173 = por %p171, %p172
    %p174 = scmp.ne.s32.totalorder %s162, %s163
    %p175 = scmp.eq.s32.totalorder %s22, 1
    %p176 = por %p174, %p175
    %p178 = scmp.ne.s32.totalorder %s163, %s177
    %p179 = scmp.eq.s32.totalorder %s22, 0
    %p180 = por %p178, %p179
    %s181 = ssub.s32 %s16, %s23
    %p182 = scmp.eq.s32.totalorder %s181, 0
    %s184 = sadd.s32 %s183, 1
    %s185 = scalar_select %p182, %s183, %s184
    %p188 = pneg %p182
    %p189 = scmp.eq.s32.totalorder %s16, 1
    %p190 = por %p188, %p189
    %p191 = scmp.ne.s32.totalorder %s183, %s186
    %p192 = scmp.eq.s32.totalorder %s16, 0
    %p193 = por %p191, %p192
    %p194 = scmp.ne.s32.totalorder %s183, %s186
    %p195 = scmp.eq.s32.totalorder %s21, 1
    %p196 = por %p194, %p195
    %p197 = scmp.ne.s32.totalorder %s186, %s187
    %p198 = scmp.eq.s32.totalorder %s21, 0
    %p199 = por %p197, %p198
    %p200 = scmp.ne.s32.totalorder %s186, %s187
    %p201 = scmp.eq.s32.totalorder %s22, 1
    %p202 = por %p200, %p201
    %p204 = scmp.ne.s32.totalorder %s187, %s203
    %p205 = scmp.eq.s32.totalorder %s22, 0
    %p206 = por %p204, %p205
    %s207 = ssub.s32 %s16, %s23
    %p208 = scmp.eq.s32.totalorder %s207, 0
    %s210 = sadd.s32 %s209, 1
    %s211 = scalar_select %p208, %s209, %s210
    %p214 = pneg %p208
    %p215 = scmp.eq.s32.totalorder %s16, 1
    %p216 = por %p214, %p215
    %p217 = scmp.ne.s32.totalorder %s209, %s212
    %p218 = scmp.eq.s32.totalorder %s16, 0
    %p219 = por %p217, %p218
    %p220 = scmp.ne.s32.totalorder %s209, %s212
    %p221 = scmp.eq.s32.totalorder %s21, 1
    %p222 = por %p220, %p221
    %p223 = scmp.ne.s32.totalorder %s212, %s213
    %p224 = scmp.eq.s32.totalorder %s21, 0
    %p225 = por %p223, %p224
    %p226 = scmp.ne.s32.totalorder %s212, %s213
    %p227 = scmp.eq.s32.totalorder %s22, 1
    %p228 = por %p226, %p227
    %p230 = scmp.ne.s32.totalorder %s213, %s229
    %p231 = scmp.eq.s32.totalorder %s22, 0
    %p232 = por %p230, %p231
    %p233 = scmp.le.s32.totalorder 1, %s16
    %p234 = scmp.lt.s32.totalorder %s16, 3
    %p235 = pnand %p233, %p234
    %p236 = pneg %p235
    // Predicated region
    $region9: #{_lambda_.1} parent=5 // pred_check
      _
    $region10: #{_lambda_.1} parent=5 // pred_check_branch
      %238 = sbr.rel (%p235) target = $region12
    $region11: #{_lambda_.1} parent=5 // pred_region
      %s239 = ssub.s32 %s16, 1
      // Predicated region
      $region13: #{_lambda_.1} parent=11 // pred_check
        %p240 = pneg %p89
      $region14: #{_lambda_.1} parent=11 // pred_check_branch
        %242 = sbr.rel (%p240) target = $region16
      $region15: #{_lambda_.1} parent=11 // pred_region
        _
      $region16: #{_lambda_.1} parent=11 // pred_fallthru
        _
      // Predicated region
      $region17: #{_lambda_.1} parent=11 // pred_check
        %p243 = pneg %p110
      $region18: #{_lambda_.1} parent=11 // pred_check_branch
        %245 = sbr.rel (%p243) target = $region20
      $region19: #{_lambda_.1} parent=11 // pred_region
        _
      $region20: #{_lambda_.1} parent=11 // pred_fallthru
        _
      // Predicated region
      $region21: #{_lambda_.1} parent=11 // pred_check
        %p246 = pneg %p131
      $region22: #{_lambda_.1} parent=11 // pred_check_branch
        %248 = sbr.rel (%p246) target = $region24
      $region23: #{_lambda_.1} parent=11 // pred_region
        _
      $region24: #{_lambda_.1} parent=11 // pred_fallthru
        _
      // Predicated region
      $region25: #{_lambda_.1} parent=11 // pred_check
        %p249 = pneg %p152
      $region26: #{_lambda_.1} parent=11 // pred_check_branch
        %251 = sbr.rel (%p249) target = $region28
      $region27: #{_lambda_.1} parent=11 // pred_region
        _
      $region28: #{_lambda_.1} parent=11 // pred_fallthru
        _
      // Predicated region
      $region29: #{_lambda_.1} parent=11 // pred_check
        %p252 = pneg %p173
      $region30: #{_lambda_.1} parent=11 // pred_check_branch
        %254 = sbr.rel (%p252) target = $region32
      $region31: #{_lambda_.1} parent=11 // pred_region
        _
      $region32: #{_lambda_.1} parent=11 // pred_fallthru
        _
    $region12: #{_lambda_.1} parent=5 // pred_fallthru
      _
    %p255 = scmp.lt.s32.totalorder %s16, 2
    // Predicated region
    $region33: #{_lambda_.1} parent=5 // pred_check
      %p256 = pneg %p255
    $region34: #{_lambda_.1} parent=5 // pred_check_branch
      %258 = sbr.rel (%p256) target = $region36
    $region35: #{_lambda_.1} parent=5 // pred_region
      // Predicated region
      $region37: #{_lambda_.1} parent=35 // pred_check
        %p259 = pneg %p36
      $region38: #{_lambda_.1} parent=35 // pred_check_branch
        %261 = sbr.rel (%p259) target = $region40
      $region39: #{_lambda_.1} parent=35 // pred_region
        %p262 = scmp.lt.s32.totalorder %s16, 1
        %s263 = scalar_select %p262, %s16, 1
        %s264 = smul.addr %s263, 2
        %s265 = smul.addr %s264, 4
        %s266 = scalar_lea.vmem %s0, %s265
      $region40: #{_lambda_.1} parent=35 // pred_fallthru
        _
      // Predicated region
      $region41: #{_lambda_.1} parent=35 // pred_check
        %p267 = pneg %p62
      $region42: #{_lambda_.1} parent=35 // pred_check_branch
        %269 = sbr.rel (%p267) target = $region44
      $region43: #{_lambda_.1} parent=35 // pred_region
        %p270 = scmp.lt.s32.totalorder %s16, 1
        %s271 = scalar_select %p270, %s16, 1
        %s272 = smul.addr %s271, 2
        %s273 = smul.addr %s272, 4
        %s274 = scalar_lea.vmem %s1, %s273
      $region44: #{_lambda_.1} parent=35 // pred_fallthru
        _
    $region36: #{_lambda_.1} parent=5 // pred_fallthru
      _
    %p275 = scmp.le.s32.totalorder 1, %s16
    %p276 = scmp.lt.s32.totalorder %s16, 3
    %p277 = pnand %p275, %p276
    %p278 = pneg %p277
    // Predicated region
    $region45: #{_lambda_.1} parent=5 // pred_check
      _
    $region46: #{_lambda_.1} parent=5 // pred_check_branch
      %280 = sbr.rel (%p277) target = $region48
    $region47: #{_lambda_.1} parent=5 // pred_region
      %s281 = ssub.s32 %s16, 1
      %p282 = scmp.lt.s32.totalorder %s21, 1
      %s283 = scalar_select %p282, %s21, 1
      %s284 = smul.addr %s283, 2
      %s285 = smul.addr %s284, 4
      %s286 = scalar_lea.vmem %s0, %s285
      %p287 = pneg %p42
      %p288 = pneg %p39
      %p289 = scmp.lt.s32.totalorder %s21, 1
      %s290 = scalar_select %p289, %s21, 1
      %s291 = smul.addr %s290, 2
      %s292 = smul.addr %s291, 4
      %s293 = scalar_lea.vmem %s1, %s292
      %p294 = pneg %p68
      %p295 = pneg %p65
      %p296 = pneg %p89
      %p297 = pneg %p86
      %p298 = pneg %p110
      %p299 = pneg %p107
      %p300 = pneg %p131
      %p301 = pneg %p128
      %p302 = pneg %p152
      %p303 = pneg %p149
      %p304 = pneg %p173
      %p305 = pneg %p170
      %p306 = pneg %p199
      %p307 = pneg %p196
      %p308 = scmp.lt.s32.totalorder %s21, 1
      %s309 = scalar_select %p308, %s21, 1
      %s310 = scalar_lea.vmem %s7, %s309
      %p311 = pneg %p225
      %p312 = pneg %p222
      %p313 = scmp.lt.s32.totalorder %s21, 1
      %s314 = scalar_select %p313, %s21, 1
      %s315 = scalar_lea.vmem %s8, %s314
      %p316 = scmp.lt.s32.totalorder %s21, 1
      %s317 = scalar_select %p316, %s21, 1
      %s318 = smul.addr %s317, 2
      %s319 = smul.addr %s318, 4
      %s320 = scalar_lea.vmem %s0, %s319
      %p321 = scmp.lt.s32.totalorder %s21, 1
      %s322 = scalar_select %p321, %s21, 1
      %s323 = smul.addr %s322, 2
      %s324 = smul.addr %s323, 4
      %s325 = scalar_lea.vmem %s1, %s324
      %p326 = scmp.lt.s32.totalorder %s21, 1
      %s327 = scalar_select %p326, %s21, 1
      %s328 = scalar_lea.vmem %s7, %s327
      %p329 = scmp.lt.s32.totalorder %s21, 1
      %s330 = scalar_select %p329, %s21, 1
      %s331 = scalar_lea.vmem %s8, %s330
      %v333 = vld [vmem:[%s2] sm:$0xff]
      %v334 = vld [vmem:[%s2 + $0x8] sm:$0xff]
      %v335 = vld [vmem:[%s2 + $0x10] sm:$0x1]
      %v336 = vld [vmem:[%s2 + $0x18] sm:$0x1]
      %v337 = vld [vmem:[%s3] sm:$0xff]
      %v338 = vpack.c.bf16 %v337, %v337
      %v339 = vld [vmem:[%s5] sm:$0xff]
      %v340 = vpack.c.bf16 %v339, %v339
      %v341 = vld [vmem:[%s4] sm:$0xff]
      %s342 = sld [smem:[#allocation2]]
      %v343 = vld [vmem:[%s320] sm:$0xff]
      %v345 = vcombine.high %v343, %v343
      %347 = vrot.lane.b32.xlu0 %v343, 17
      %v348 = vpop.permute.xlu0 %347
      %349 = vrot.lane.b32.xlu0 %v345, 17
      %v350 = vpop.permute.xlu0 %349
      %v351 = vlaneseq
      %v352 = vand.u32 %v351, 127
      %vm353 = vcmp.lt.s32.totalorder %v352, 17
      %v354 = vsel %vm353, %v348, %v350
      %v355 = vsel %vm353, %v350, %v348
      %v356 = vlaneseq
      %v357 = vshrl.u32 %v356, 7
      %v358 = vsub.s32 0, %v357
      %v359 = vrot.slane %v333, %v358
      %v360 = vlaneseq
      %v361 = vshrl.u32 %v360, 7
      %v362 = vsub.s32 0, %v361
      %v363 = vrot.slane %v334, %v362
      %v364 = vmul.f32 %v355, %v359
      %v365 = vmul.f32 %v354, %v363
      %366 = vrot.lane.b32.xlu0 %v343, 16
      %v367 = vpop.permute.xlu0 %366
      %368 = vrot.lane.b32.xlu0 %v345, 16
      %v369 = vpop.permute.xlu0 %368
      %vm370 = vcmp.lt.s32.totalorder %v352, 16
      %v371 = vsel %vm370, %v367, %v369
      %v372 = vsel %vm370, %v369, %v367
      %v373 = vlaneseq
      %v374 = vshrl.u32 %v373, 7
      %v375 = vsub.s32 1, %v374
      %v376 = vrot.slane %v333, %v375
      %v377 = vlaneseq
      %v378 = vshrl.u32 %v377, 7
      %v379 = vsub.s32 1, %v378
      %v380 = vrot.slane %v334, %v379
      %v381 = vmul.f32 %v372, %v376
      %v382 = vmul.f32 %v371, %v380
      %383 = vrot.lane.b32.xlu0 %v343, 15
      %v384 = vpop.permute.xlu0 %383
      %385 = vrot.lane.b32.xlu0 %v345, 15
      %v386 = vpop.permute.xlu0 %385
      %vm387 = vcmp.lt.s32.totalorder %v352, 15
      %v388 = vsel %vm387, %v384, %v386
      %v389 = vsel %vm387, %v386, %v384
      %v390 = vlaneseq
      %v391 = vshrl.u32 %v390, 7
      %v392 = vsub.s32 2, %v391
      %v393 = vrot.slane %v333, %v392
      %v394 = vlaneseq
      %v395 = vshrl.u32 %v394, 7
      %v396 = vsub.s32 2, %v395
      %v397 = vrot.slane %v334, %v396
      %v398 = vmul.f32 %v389, %v393
      %v399 = vmul.f32 %v388, %v397
      %400 = vrot.lane.b32.xlu0 %v343, 1
      %v401 = vpop.permute.xlu0 %400
      %402 = vrot.lane.b32.xlu0 %v345, 1
      %v403 = vpop.permute.xlu0 %402
      %vm404 = vcmp.lt.s32.totalorder %v352, 1
      %v405 = vsel %vm404, %v401, %v403
      %v406 = vsel %vm404, %v403, %v401
      %v407 = vlaneseq
      %v408 = vshrl.u32 %v407, 7
      %v409 = vsub.s32 3, %v408
      %v410 = vrot.slane %v333, %v409
      %v411 = vlaneseq
      %v412 = vshrl.u32 %v411, 7
      %v413 = vsub.s32 3, %v412
      %v414 = vrot.slane %v334, %v413
      %v415 = vmul.f32 %v406, %v410
      %v416 = vmul.f32 %v405, %v414
      %417 = vrot.lane.b32.xlu0 %v343, 127
      %v418 = vpop.permute.xlu0 %417
      %419 = vrot.lane.b32.xlu0 %v345, 127
      %v420 = vpop.permute.xlu0 %419
      %vm421 = vcmp.lt.s32.totalorder %v352, 127
      %v422 = vsel %vm421, %v418, %v420
      %v423 = vsel %vm421, %v420, %v418
      %v424 = vlaneseq
      %v425 = vshrl.u32 %v424, 7
      %v426 = vsub.s32 5, %v425
      %v427 = vrot.slane %v333, %v426
      %v428 = vlaneseq
      %v429 = vshrl.u32 %v428, 7
      %v430 = vsub.s32 5, %v429
      %v431 = vrot.slane %v334, %v430
      %v432 = vmul.f32 %v422, %v427
      %v433 = vmul.f32 %v423, %v431
      %434 = vrot.lane.b32.xlu0 %v343, 113
      %v435 = vpop.permute.xlu0 %434
      %436 = vrot.lane.b32.xlu0 %v345, 113
      %v437 = vpop.permute.xlu0 %436
      %vm438 = vcmp.lt.s32.totalorder %v352, 113
      %v439 = vsel %vm438, %v435, %v437
      %v440 = vsel %vm438, %v437, %v435
      %v441 = vlaneseq
      %v442 = vshrl.u32 %v441, 7
      %v443 = vsub.s32 6, %v442
      %v444 = vrot.slane %v333, %v443
      %v445 = vlaneseq
      %v446 = vshrl.u32 %v445, 7
      %v447 = vsub.s32 6, %v446
      %v448 = vrot.slane %v334, %v447
      %v449 = vmul.f32 %v439, %v444
      %v450 = vmul.f32 %v440, %v448
      %451 = vrot.lane.b32.xlu0 %v343, 112
      %v452 = vpop.permute.xlu0 %451
      %453 = vrot.lane.b32.xlu0 %v345, 112
      %v454 = vpop.permute.xlu0 %453
      %vm455 = vcmp.lt.s32.totalorder %v352, 112
      %v456 = vsel %vm455, %v452, %v454
      %v457 = vsel %vm455, %v454, %v452
      %v458 = vlaneseq
      %v459 = vshrl.u32 %v458, 7
      %v460 = vsub.s32 7, %v459
      %v461 = vrot.slane %v333, %v460
      %v462 = vlaneseq
      %v463 = vshrl.u32 %v462, 7
      %v464 = vsub.s32 7, %v463
      %v465 = vrot.slane %v334, %v464
      %v466 = vmul.f32 %v456, %v461
      %v467 = vmul.f32 %v457, %v465
      %468 = vrot.lane.b32.xlu0 %v343, 111
      %v469 = vpop.permute.xlu0 %468
      %470 = vrot.lane.b32.xlu0 %v345, 111
      %v471 = vpop.permute.xlu0 %470
      %vm472 = vcmp.lt.s32.totalorder %v352, 111
      %v473 = vsel %vm472, %v469, %v471
      %v474 = vsel %vm472, %v471, %v469
      %v475 = vlaneseq
      %v476 = vshrl.u32 %v475, 7
      %v477 = vsub.s32 0, %v476
      %v478 = vrot.slane %v335, %v477
      %v479 = vlaneseq
      %v480 = vshrl.u32 %v479, 7
      %v481 = vsub.s32 0, %v480
      %v482 = vrot.slane %v336, %v481
      %v483 = vmul.f32 %v473, %v478
      %v484 = vmul.f32 %v474, %v482
      %v487 = vrot.slane %v381, 4
      %v488 = vrot.slane %v382, 4
      %v493 = vrot.slane %v415, 4
      %v494 = vrot.slane %v416, 4
      %v499 = vrot.slane %v432, 4
      %v500 = vrot.slane %v433, 4
      %v505 = vrot.slane %v466, 4
      %v506 = vrot.slane %v467, 4
      %vm509 = vcmask 1043456
      %v510 = vsel %vm509, %v364, %v487
      %v511 = vsel %vm509, %v365, %v488
      %v512 = vsel %vm509, %v398, %v493
      %v513 = vsel %vm509, %v399, %v494
      %v514 = vsel %vm509, %v343, %v499
      %v515 = vsel %vm509, %v345, %v500
      %v516 = vsel %vm509, %v449, %v505
      %v517 = vsel %vm509, %v450, %v506
      %v518 = vpack.c.bf16 %v512, %v510
      %v519 = vpack.c.bf16 %v513, %v511
      %v520 = vpack.c.bf16 %v516, %v514
      %v521 = vpack.c.bf16 %v517, %v515
      %v522 = vpack.c.bf16 %v483, %v483
      %v523 = vpack.c.bf16 %v484, %v484
      %525 = vset.pattern.permute.xlu0 0
      %526 = vperm.xlu0 %525, %v341
      %v527 = vpop.permute.xlu0 %526
      %vm529 = vcmask 293888
      %v531 = vsel %vm529, %v338, 0
      %vm533 = vcmask 1041408
      %v535 = vsel %vm533, %v522, 0
      %v538 = vsel %vm533, %v523, 0
      %540 = vmatprep.subr.bf16.mxu0 %v519
      %541 = vmatpush1.bf16.msra.mxu0 %v518
      %542 = vmatprep.subr.bf16.mxu0 %v521
      %543 = vmatpush1.bf16.msra.mxu0 %v520
      %544 = vmatprep.subr.bf16.mxu0 %v538
      %545 = vmatpush1.bf16.msra.mxu0 %v535
      %546 = vmatprep.subr.bf16.mxu0 0
      %547 = vmatpush1.bf16.msra.mxu0 0
      %548 = vmatprep.subr.bf16.mxu0 0
      %549 = vmatpush1.bf16.msra.mxu0 0
      %550 = vmatprep.subr.bf16.mxu0 0
      %551 = vmatpush1.bf16.msra.mxu0 0
      %552 = vmatprep.subr.bf16.mxu0 0
      %553 = vmatpush1.bf16.msra.mxu0 0
      %554 = vmatprep.subr.bf16.mxu0 0
      %555 = vmatpush1.bf16.msra.mxu0 0
      %556 = vmatprep.subr.bf16.mxu0 0
      %557 = vmatpush1.bf16.msra.mxu0 0
      %558 = vmatprep.subr.bf16.mxu0 0
      %559 = vmatpush1.bf16.msra.mxu0 0
      %560 = vmatprep.subr.bf16.mxu0 0
      %561 = vmatpush1.bf16.msra.mxu0 0
      %562 = vmatprep.subr.bf16.mxu0 0
      %563 = vmatpush1.bf16.msra.mxu0 0
      %564 = vmatprep.subr.bf16.mxu0 0
      %565 = vmatpush1.bf16.msra.mxu0 0
      %566 = vmatprep.subr.bf16.mxu0 0
      %567 = vmatpush1.bf16.msra.mxu0 0
      %568 = vmatprep.subr.bf16.mxu0 0
      %569 = vmatpush1.bf16.msra.mxu0 0
      %570 = vmatprep.subr.bf16.mxu0 0
      %571 = vmatpush1.bf16.msra.mxu0 0
      %572 = vmatprep.mubr.bf16.mxu0 0
      %573 = vmatmul.mubr.bf16.gmra.mrb[0].mxu0 %v531
      %v574 = vpop.f32.mrb[0].mxu0
      %v575 = vadd.f32 %v527, %v574
      %v576 = vpop.f32.mrb[0].mxu0
      %v577 = vadd.f32 %v527, %v576
      %v578 = vpop.f32.mrb[0].mxu0
      %v579 = vpop.f32.mrb[0].mxu0
      %580 = vdwg.mxu0
      %vm581 = vcmp.gt.f32.partialorder %v575, 0.0
      %vm582 = vcmp.gt.f32.partialorder %v577, 0.0
      %v583 = vmul.f32 %v575, 0.2
      %v584 = vmul.f32 %v577, 0.2
      %v585 = vsel %vm581, %v575, %v583
      %v586 = vsel %vm582, %v577, %v584
      %587 = vrot.lane.b32.xlu0 %v585, 17
      %v588 = vpop.permute.xlu0 %587
      %589 = vrot.lane.b32.xlu0 %v586, 17
      %v590 = vpop.permute.xlu0 %589
      %v591 = vsel %vm353, %v588, %v590
      %v592 = vsel %vm353, %v590, %v588
      %v593 = vmul.f32 %v592, %v359
      %v594 = vmul.f32 %v591, %v363
      %595 = vrot.lane.b32.xlu0 %v585, 16
      %v596 = vpop.permute.xlu0 %595
      %597 = vrot.lane.b32.xlu0 %v586, 16
      %v598 = vpop.permute.xlu0 %597
      %v599 = vsel %vm370, %v596, %v598
      %v600 = vsel %vm370, %v598, %v596
      %v601 = vmul.f32 %v600, %v376
      %v602 = vmul.f32 %v599, %v380
      %603 = vrot.lane.b32.xlu0 %v585, 15
      %v604 = vpop.permute.xlu0 %603
      %605 = vrot.lane.b32.xlu0 %v586, 15
      %v606 = vpop.permute.xlu0 %605
      %v607 = vsel %vm387, %v604, %v606
      %v608 = vsel %vm387, %v606, %v604
      %v609 = vmul.f32 %v608, %v393
      %v610 = vmul.f32 %v607, %v397
      %611 = vrot.lane.b32.xlu0 %v585, 1
      %v612 = vpop.permute.xlu0 %611
      %613 = vrot.lane.b32.xlu0 %v586, 1
      %v614 = vpop.permute.xlu0 %613
      %v615 = vsel %vm404, %v612, %v614
      %v616 = vsel %vm404, %v614, %v612
      %v617 = vmul.f32 %v616, %v410
      %v618 = vmul.f32 %v615, %v414
      %619 = vrot.lane.b32.xlu0 %v585, 127
      %v620 = vpop.permute.xlu0 %619
      %621 = vrot.lane.b32.xlu0 %v586, 127
      %v622 = vpop.permute.xlu0 %621
      %v623 = vsel %vm421, %v620, %v622
      %v624 = vsel %vm421, %v622, %v620
      %v625 = vmul.f32 %v623, %v427
      %v626 = vmul.f32 %v624, %v431
      %627 = vrot.lane.b32.xlu0 %v585, 113
      %v628 = vpop.permute.xlu0 %627
      %629 = vrot.lane.b32.xlu0 %v586, 113
      %v630 = vpop.permute.xlu0 %629
      %v631 = vsel %vm438, %v628, %v630
      %v632 = vsel %vm438, %v630, %v628
      %v633 = vmul.f32 %v631, %v444
      %v634 = vmul.f32 %v632, %v448
      %635 = vrot.lane.b32.xlu0 %v585, 112
      %v636 = vpop.permute.xlu0 %635
      %637 = vrot.lane.b32.xlu0 %v586, 112
      %v638 = vpop.permute.xlu0 %637
      %v639 = vsel %vm455, %v636, %v638
      %v640 = vsel %vm455, %v638, %v636
      %v641 = vmul.f32 %v639, %v461
      %v642 = vmul.f32 %v640, %v465
      %643 = vrot.lane.b32.xlu0 %v585, 111
      %v644 = vpop.permute.xlu0 %643
      %645 = vrot.lane.b32.xlu0 %v586, 111
      %v646 = vpop.permute.xlu0 %645
      %v647 = vsel %vm472, %v644, %v646
      %v648 = vsel %vm472, %v646, %v644
      %v649 = vmul.f32 %v647, %v478
      %v650 = vmul.f32 %v648, %v482
      %v651 = vpack.c.bf16 %v601, %v593
      %v652 = vpack.c.bf16 %v602, %v594
      %v653 = vpack.c.bf16 %v617, %v609
      %v654 = vpack.c.bf16 %v618, %v610
      %v655 = vpack.c.bf16 %v625, %v585
      %v656 = vpack.c.bf16 %v626, %v586
      %v657 = vpack.c.bf16 %v641, %v633
      %v658 = vpack.c.bf16 %v642, %v634
      %v659 = vpack.c.bf16 %v649, %v649
      %v660 = vpack.c.bf16 %v650, %v650
      %vm661 = vcmask 588800
      %v663 = vsel %vm661, %v340, 0
      %v666 = vsel %vm509, %v659, 0
      %v669 = vsel %vm509, %v660, 0
      %671 = vmatprep.subr.bf16.mxu0 %v652
      %672 = vmatpush1.bf16.msra.mxu0 %v651
      %673 = vmatprep.subr.bf16.mxu0 %v654
      %674 = vmatpush1.bf16.msra.mxu0 %v653
      %675 = vmatprep.subr.bf16.mxu0 %v656
      %676 = vmatpush1.bf16.msra.mxu0 %v655
      %677 = vmatprep.subr.bf16.mxu0 %v658
      %678 = vmatpush1.bf16.msra.mxu0 %v657
      %679 = vmatprep.subr.bf16.mxu0 %v669
      %680 = vmatpush1.bf16.msra.mxu0 %v666
      %681 = vmatprep.subr.bf16.mxu0 0
      %682 = vmatpush1.bf16.msra.mxu0 0
      %683 = vmatprep.subr.bf16.mxu0 0
      %684 = vmatpush1.bf16.msra.mxu0 0
      %685 = vmatprep.subr.bf16.mxu0 0
      %686 = vmatpush1.bf16.msra.mxu0 0
      %687 = vmatprep.subr.bf16.mxu0 0
      %688 = vmatpush1.bf16.msra.mxu0 0
      %689 = vmatprep.subr.bf16.mxu0 0
      %690 = vmatpush1.bf16.msra.mxu0 0
      %691 = vmatprep.subr.bf16.mxu0 0
      %692 = vmatpush1.bf16.msra.mxu0 0
      %693 = vmatprep.subr.bf16.mxu0 0
      %694 = vmatpush1.bf16.msra.mxu0 0
      %695 = vmatprep.subr.bf16.mxu0 0
      %696 = vmatpush1.bf16.msra.mxu0 0
      %697 = vmatprep.subr.bf16.mxu0 0
      %698 = vmatpush1.bf16.msra.mxu0 0
      %699 = vmatprep.subr.bf16.mxu0 0
      %700 = vmatpush1.bf16.msra.mxu0 0
      %701 = vmatprep.subr.bf16.mxu0 0
      %702 = vmatpush1.bf16.msra.mxu0 0
      %703 = vmatprep.mubr.bf16.mxu0 0
      %704 = vmatmul.mubr.bf16.gmra.mrb[0].mxu0 %v663
      %v705 = vpop.f32.mrb[0].mxu0
      %v706 = vadd.f32 0.0, %v705
      %v707 = vpop.f32.mrb[0].mxu0
      %v708 = vadd.f32 0.0, %v707
      %v709 = vpop.f32.mrb[0].mxu0
      %v710 = vpop.f32.mrb[0].mxu0
      %711 = vdwg.mxu0
      %v712 = vstv %s342
      %v713 = vadd.f32 %v706, %v712
      %v714 = vadd.f32 %v708, %v712
      %v715 = vld [vmem:[%s325] sm:$0xff]
      %v717 = vcombine.high %v715, %v715
      %719 = vrot.lane.b32.xlu0 %v715, 17
      %v720 = vpop.permute.xlu0 %719
      %721 = vrot.lane.b32.xlu0 %v717, 17
      %v722 = vpop.permute.xlu0 %721
      %v723 = vsel %vm353, %v720, %v722
      %v724 = vsel %vm353, %v722, %v720
      %v725 = vmul.f32 %v724, %v359
      %v726 = vmul.f32 %v723, %v363
      %727 = vrot.lane.b32.xlu0 %v715, 16
      %v728 = vpop.permute.xlu0 %727
      %729 = vrot.lane.b32.xlu0 %v717, 16
      %v730 = vpop.permute.xlu0 %729
      %v731 = vsel %vm370, %v728, %v730
      %v732 = vsel %vm370, %v730, %v728
      %v733 = vmul.f32 %v732, %v376
      %v734 = vmul.f32 %v731, %v380
      %735 = vrot.lane.b32.xlu0 %v715, 15
      %v736 = vpop.permute.xlu0 %735
      %737 = vrot.lane.b32.xlu0 %v717, 15
      %v738 = vpop.permute.xlu0 %737
      %v739 = vsel %vm387, %v736, %v738
      %v740 = vsel %vm387, %v738, %v736
      %v741 = vmul.f32 %v740, %v393
      %v742 = vmul.f32 %v739, %v397
      %743 = vrot.lane.b32.xlu0 %v715, 1
      %v744 = vpop.permute.xlu0 %743
      %745 = vrot.lane.b32.xlu0 %v717, 1
      %v746 = vpop.permute.xlu0 %745
      %v747 = vsel %vm404, %v744, %v746
      %v748 = vsel %vm404, %v746, %v744
      %v749 = vmul.f32 %v748, %v410
      %v750 = vmul.f32 %v747, %v414
      %751 = vrot.lane.b32.xlu0 %v715, 127
      %v752 = vpop.permute.xlu0 %751
      %753 = vrot.lane.b32.xlu0 %v717, 127
      %v754 = vpop.permute.xlu0 %753
      %v755 = vsel %vm421, %v752, %v754
      %v756 = vsel %vm421, %v754, %v752
      %v757 = vmul.f32 %v755, %v427
      %v758 = vmul.f32 %v756, %v431
      %759 = vrot.lane.b32.xlu0 %v715, 113
      %v760 = vpop.permute.xlu0 %759
      %761 = vrot.lane.b32.xlu0 %v717, 113
      %v762 = vpop.permute.xlu0 %761
      %v763 = vsel %vm438, %v760, %v762
      %v764 = vsel %vm438, %v762, %v760
      %v765 = vmul.f32 %v763, %v444
      %v766 = vmul.f32 %v764, %v448
      %767 = vrot.lane.b32.xlu0 %v715, 112
      %v768 = vpop.permute.xlu0 %767
      %769 = vrot.lane.b32.xlu0 %v717, 112
      %v770 = vpop.permute.xlu0 %769
      %v771 = vsel %vm455, %v768, %v770
      %v772 = vsel %vm455, %v770, %v768
      %v773 = vmul.f32 %v771, %v461
      %v774 = vmul.f32 %v772, %v465
      %775 = vrot.lane.b32.xlu0 %v715, 111
      %v776 = vpop.permute.xlu0 %775
      %777 = vrot.lane.b32.xlu0 %v717, 111
      %v778 = vpop.permute.xlu0 %777
      %v779 = vsel %vm472, %v776, %v778
      %v780 = vsel %vm472, %v778, %v776
      %v781 = vmul.f32 %v779, %v478
      %v782 = vmul.f32 %v780, %v482
      %v785 = vrot.slane %v733, 4
      %v786 = vrot.slane %v734, 4
      %v791 = vrot.slane %v749, 4
      %v792 = vrot.slane %v750, 4
      %v797 = vrot.slane %v757, 4
      %v798 = vrot.slane %v758, 4
      %v803 = vrot.slane %v773, 4
      %v804 = vrot.slane %v774, 4
      %v807 = vsel %vm509, %v725, %v785
      %v808 = vsel %vm509, %v726, %v786
      %v809 = vsel %vm509, %v741, %v791
      %v810 = vsel %vm509, %v742, %v792
      %v811 = vsel %vm509, %v715, %v797
      %v812 = vsel %vm509, %v717, %v798
      %v813 = vsel %vm509, %v765, %v803
      %v814 = vsel %vm509, %v766, %v804
      %v815 = vpack.c.bf16 %v809, %v807
      %v816 = vpack.c.bf16 %v810, %v808
      %v817 = vpack.c.bf16 %v813, %v811
      %v818 = vpack.c.bf16 %v814, %v812
      %v819 = vpack.c.bf16 %v781, %v781
      %v820 = vpack.c.bf16 %v782, %v782
      %v822 = vsel %vm533, %v819, 0
      %v825 = vsel %vm533, %v820, 0
      %827 = vmatprep.subr.bf16.mxu0 %v816
      %828 = vmatpush1.bf16.msra.mxu0 %v815
      %829 = vmatprep.subr.bf16.mxu0 %v818
      %830 = vmatpush1.bf16.msra.mxu0 %v817
      %831 = vmatprep.subr.bf16.mxu0 %v825
      %832 = vmatpush1.bf16.msra.mxu0 %v822
      %833 = vmatprep.subr.bf16.mxu0 0
      %834 = vmatpush1.bf16.msra.mxu0 0
      %835 = vmatprep.subr.bf16.mxu0 0
      %836 = vmatpush1.bf16.msra.mxu0 0
      %837 = vmatprep.subr.bf16.mxu0 0
      %838 = vmatpush1.bf16.msra.mxu0 0
      %839 = vmatprep.subr.bf16.mxu0 0
      %840 = vmatpush1.bf16.msra.mxu0 0
      %841 = vmatprep.subr.bf16.mxu0 0
      %842 = vmatpush1.bf16.msra.mxu0 0
      %843 = vmatprep.subr.bf16.mxu0 0
      %844 = vmatpush1.bf16.msra.mxu0 0
      %845 = vmatprep.subr.bf16.mxu0 0
      %846 = vmatpush1.bf16.msra.mxu0 0
      %847 = vmatprep.subr.bf16.mxu0 0
      %848 = vmatpush1.bf16.msra.mxu0 0
      %849 = vmatprep.subr.bf16.mxu0 0
      %850 = vmatpush1.bf16.msra.mxu0 0
      %851 = vmatprep.subr.bf16.mxu0 0
      %852 = vmatpush1.bf16.msra.mxu0 0
      %853 = vmatprep.subr.bf16.mxu0 0
      %854 = vmatpush1.bf16.msra.mxu0 0
      %855 = vmatprep.subr.bf16.mxu0 0
      %856 = vmatpush1.bf16.msra.mxu0 0
      %857 = vmatprep.subr.bf16.mxu0 0
      %858 = vmatpush1.bf16.msra.mxu0 0
      %859 = vmatprep.mubr.bf16.mxu0 0
      %860 = vmatmul.mubr.bf16.gmra.mrb[0].mxu0 %v531
      %v861 = vpop.f32.mrb[0].mxu0
      %v862 = vadd.f32 %v527, %v861
      %v863 = vpop.f32.mrb[0].mxu0
      %v864 = vadd.f32 %v527, %v863
      %v865 = vpop.f32.mrb[0].mxu0
      %v866 = vpop.f32.mrb[0].mxu0
      %867 = vdwg.mxu0
      %vm868 = vcmp.gt.f32.partialorder %v862, 0.0
      %vm869 = vcmp.gt.f32.partialorder %v864, 0.0
      %v870 = vmul.f32 %v862, 0.2
      %v871 = vmul.f32 %v864, 0.2
      %v872 = vsel %vm868, %v862, %v870
      %v873 = vsel %vm869, %v864, %v871
      %874 = vrot.lane.b32.xlu0 %v872, 17
      %v875 = vpop.permute.xlu0 %874
      %876 = vrot.lane.b32.xlu0 %v873, 17
      %v877 = vpop.permute.xlu0 %876
      %v878 = vsel %vm353, %v875, %v877
      %v879 = vsel %vm353, %v877, %v875
      %v880 = vmul.f32 %v879, %v359
      %v881 = vmul.f32 %v878, %v363
      %882 = vrot.lane.b32.xlu0 %v872, 16
      %v883 = vpop.permute.xlu0 %882
      %884 = vrot.lane.b32.xlu0 %v873, 16
      %v885 = vpop.permute.xlu0 %884
      %v886 = vsel %vm370, %v883, %v885
      %v887 = vsel %vm370, %v885, %v883
      %v888 = vmul.f32 %v887, %v376
      %v889 = vmul.f32 %v886, %v380
      %890 = vrot.lane.b32.xlu0 %v872, 15
      %v891 = vpop.permute.xlu0 %890
      %892 = vrot.lane.b32.xlu0 %v873, 15
      %v893 = vpop.permute.xlu0 %892
      %v894 = vsel %vm387, %v891, %v893
      %v895 = vsel %vm387, %v893, %v891
      %v896 = vmul.f32 %v895, %v393
      %v897 = vmul.f32 %v894, %v397
      %898 = vrot.lane.b32.xlu0 %v872, 1
      %v899 = vpop.permute.xlu0 %898
      %900 = vrot.lane.b32.xlu0 %v873, 1
      %v901 = vpop.permute.xlu0 %900
      %v902 = vsel %vm404, %v899, %v901
      %v903 = vsel %vm404, %v901, %v899
      %v904 = vmul.f32 %v903, %v410
      %v905 = vmul.f32 %v902, %v414
      %906 = vrot.lane.b32.xlu0 %v872, 127
      %v907 = vpop.permute.xlu0 %906
      %908 = vrot.lane.b32.xlu0 %v873, 127
      %v909 = vpop.permute.xlu0 %908
      %v910 = vsel %vm421, %v907, %v909
      %v911 = vsel %vm421, %v909, %v907
      %v912 = vmul.f32 %v910, %v427
      %v913 = vmul.f32 %v911, %v431
      %914 = vrot.lane.b32.xlu0 %v872, 113
      %v915 = vpop.permute.xlu0 %914
      %916 = vrot.lane.b32.xlu0 %v873, 113
      %v917 = vpop.permute.xlu0 %916
      %v918 = vsel %vm438, %v915, %v917
      %v919 = vsel %vm438, %v917, %v915
      %v920 = vmul.f32 %v918, %v444
      %v921 = vmul.f32 %v919, %v448
      %922 = vrot.lane.b32.xlu0 %v872, 112
      %v923 = vpop.permute.xlu0 %922
      %924 = vrot.lane.b32.xlu0 %v873, 112
      %v925 = vpop.permute.xlu0 %924
      %v926 = vsel %vm455, %v923, %v925
      %v927 = vsel %vm455, %v925, %v923
      %v928 = vmul.f32 %v926, %v461
      %v929 = vmul.f32 %v927, %v465
      %930 = vrot.lane.b32.xlu0 %v872, 111
      %v931 = vpop.permute.xlu0 %930
      %932 = vrot.lane.b32.xlu0 %v873, 111
      %v933 = vpop.permute.xlu0 %932
      %v934 = vsel %vm472, %v931, %v933
      %v935 = vsel %vm472, %v933, %v931
      %v936 = vmul.f32 %v934, %v478
      %v937 = vmul.f32 %v935, %v482
      %v938 = vpack.c.bf16 %v888, %v880
      %v939 = vpack.c.bf16 %v889, %v881
      %v940 = vpack.c.bf16 %v904, %v896
      %v941 = vpack.c.bf16 %v905, %v897
      %v942 = vpack.c.bf16 %v912, %v872
      %v943 = vpack.c.bf16 %v913, %v873
      %v944 = vpack.c.bf16 %v928, %v920
      %v945 = vpack.c.bf16 %v929, %v921
      %v946 = vpack.c.bf16 %v936, %v936
      %v947 = vpack.c.bf16 %v937, %v937
      %v949 = vsel %vm509, %v946, 0
      %v952 = vsel %vm509, %v947, 0
      %954 = vmatprep.subr.bf16.mxu0 %v939
      %955 = vmatpush1.bf16.msra.mxu0 %v938
      %956 = vmatprep.subr.bf16.mxu0 %v941
      %957 = vmatpush1.bf16.msra.mxu0 %v940
      %958 = vmatprep.subr.bf16.mxu0 %v943
      %959 = vmatpush1.bf16.msra.mxu0 %v942
      %960 = vmatprep.subr.bf16.mxu0 %v945
      %961 = vmatpush1.bf16.msra.mxu0 %v944
      %962 = vmatprep.subr.bf16.mxu0 %v952
      %963 = vmatpush1.bf16.msra.mxu0 %v949
      %964 = vmatprep.subr.bf16.mxu0 0
      %965 = vmatpush1.bf16.msra.mxu0 0
      %966 = vmatprep.subr.bf16.mxu0 0
      %967 = vmatpush1.bf16.msra.mxu0 0
      %968 = vmatprep.subr.bf16.mxu0 0
      %969 = vmatpush1.bf16.msra.mxu0 0
      %970 = vmatprep.subr.bf16.mxu0 0
      %971 = vmatpush1.bf16.msra.mxu0 0
      %972 = vmatprep.subr.bf16.mxu0 0
      %973 = vmatpush1.bf16.msra.mxu0 0
      %974 = vmatprep.subr.bf16.mxu0 0
      %975 = vmatpush1.bf16.msra.mxu0 0
      %976 = vmatprep.subr.bf16.mxu0 0
      %977 = vmatpush1.bf16.msra.mxu0 0
      %978 = vmatprep.subr.bf16.mxu0 0
      %979 = vmatpush1.bf16.msra.mxu0 0
      %980 = vmatprep.subr.bf16.mxu0 0
      %981 = vmatpush1.bf16.msra.mxu0 0
      %982 = vmatprep.subr.bf16.mxu0 0
      %983 = vmatpush1.bf16.msra.mxu0 0
      %984 = vmatprep.subr.bf16.mxu0 0
      %985 = vmatpush1.bf16.msra.mxu0 0
      %986 = vmatprep.mubr.bf16.mxu0 0
      %987 = vmatmul.mubr.bf16.gmra.mrb[0].mxu0 %v663
      %v988 = vpop.f32.mrb[0].mxu0
      %v989 = vadd.f32 0.0, %v988
      %v990 = vpop.f32.mrb[0].mxu0
      %v991 = vadd.f32 0.0, %v990
      %v992 = vpop.f32.mrb[0].mxu0
      %v993 = vpop.f32.mrb[0].mxu0
      %994 = vdwg.mxu0
      %v995 = vadd.f32 %v989, %v712
      %v996 = vadd.f32 %v991, %v712
      %v997 = vsub.f32 1.0, %v713
      %v998 = vsub.f32 1.0, %v714
      %v999 = vmax.f32 %v997, 0.0
      %v1000 = vmax.f32 %v998, 0.0
      %vm1001 = vcmask 1040384
      %v1002 = vsel %vm1001, %v999, 0.0
      %v1003 = vsel %vm1001, %v1000, 0.0
      %v1004 = vadd.f32 %v1002, %v1003
      %1005 = vadd.xlane.f32.xlu0 %v1004
      %v1006 = vpop.xlane.xlu0 %1005
      %v1007 = vrot.slane %v1006, 4
      %v1008 = vadd.f32 %v1006, %v1007
      %v1009 = vrot.slane %v1008, 2
      %v1010 = vadd.f32 %v1008, %v1009
      %v1011 = vrot.slane %v1010, 1
      %v1012 = vadd.f32 %v1010, %v1011
      %s1013 = vtos %v1012
      %v1014 = vadd.f32 %v995, 1.0
      %v1015 = vadd.f32 %v996, 1.0
      %v1016 = vmax.f32 %v1014, 0.0
      %v1017 = vmax.f32 %v1015, 0.0
      %v1018 = vsel %vm1001, %v1016, 0.0
      %v1019 = vsel %vm1001, %v1017, 0.0
      %v1020 = vadd.f32 %v1018, %v1019
      %1021 = vadd.xlane.f32.xlu0 %v1020
      %v1022 = vpop.xlane.xlu0 %1021
      %v1023 = vrot.slane %v1022, 4
      %v1024 = vadd.f32 %v1022, %v1023
      %v1025 = vrot.slane %v1024, 2
      %v1026 = vadd.f32 %v1024, %v1025
      %v1027 = vrot.slane %v1026, 1
      %v1028 = vadd.f32 %v1026, %v1027
      %s1029 = vtos %v1028
      %s1030 = sadd.f32 %s1013, %s1029
      %v1031 = vstv %s1030
      %1032 = vst [vmem:[%s328] sm:$0x1] %v1031
      %p1033 = scmp.lt.s32.totalorder %s21, 1
      %v1034 = vsub.f32 %v713, %v995
      %v1035 = vsub.f32 %v714, %v996
      %v1036 = vand.u32 2147483647, %v1034
      %v1037 = vand.u32 2147483647, %v1035
      %v1038 = vsel %vm1001, %v1036, 0.0
      %v1039 = vsel %vm1001, %v1037, 0.0
      %v1040 = vadd.f32 %v1038, %v1039
      %1041 = vadd.xlane.f32.xlu0 %v1040
      %v1042 = vpop.xlane.xlu0 %1041
      %v1043 = vrot.slane %v1042, 4
      %v1044 = vadd.f32 %v1042, %v1043
      %v1045 = vrot.slane %v1044, 2
      %v1046 = vadd.f32 %v1044, %v1045
      %v1047 = vrot.slane %v1046, 1
      %v1048 = vadd.f32 %v1046, %v1047
      %s1049 = vtos %v1048
      %s1050 = scalar_select %p1033, %s1049, 0.0
      %v1051 = vstv %s1050
      %1052 = vst [vmem:[%s331] sm:$0x1] %v1051
      %p1053 = scmp.lt.s32.totalorder %s21, 1
      %s1054 = scalar_select %p1053, %s21, 1
      %s1055 = scalar_lea.vmem %s7, %s1054
      %p1056 = scmp.lt.s32.totalorder %s21, 1
      %s1057 = scalar_select %p1056, %s21, 1
      %s1058 = scalar_lea.vmem %s8, %s1057
      // Predicated region
      $region49: #{_lambda_.1} parent=47 // pred_check
        %p1059 = pneg %p196
      $region50: #{_lambda_.1} parent=47 // pred_check_branch
        %1061 = sbr.rel (%p1059) target = $region52
      $region51: #{_lambda_.1} parent=47 // pred_region
        _
      $region52: #{_lambda_.1} parent=47 // pred_fallthru
        _
      // Predicated region
      $region53: #{_lambda_.1} parent=47 // pred_check
        %p1062 = pneg %p222
      $region54: #{_lambda_.1} parent=47 // pred_check_branch
        %1064 = sbr.rel (%p1062) target = $region56
      $region55: #{_lambda_.1} parent=47 // pred_region
        _
      $region56: #{_lambda_.1} parent=47 // pred_fallthru
        _
    $region48: #{_lambda_.1} parent=5 // pred_fallthru
      _
    %p1065 = scmp.le.s32.totalorder 2, %s16
    // Predicated region
    $region57: #{_lambda_.1} parent=5 // pred_check
      %p1066 = pneg %p1065
    $region58: #{_lambda_.1} parent=5 // pred_check_branch
      %1068 = sbr.rel (%p1066) target = $region60
    $region59: #{_lambda_.1} parent=5 // pred_region
      %s1069 = ssub.s32 %s16, 2
      // Predicated region
      $region61: #{_lambda_.1} parent=59 // pred_check
        %p1070 = pneg %p202
      $region62: #{_lambda_.1} parent=59 // pred_check_branch
        %1072 = sbr.rel (%p1070) target = $region64
      $region63: #{_lambda_.1} parent=59 // pred_region
        %p1073 = scmp.lt.s32.totalorder %s22, 1
        %s1074 = scalar_select %p1073, %s22, 1
        %s1075 = scalar_lea.vmem %s7, %s1074
      $region64: #{_lambda_.1} parent=59 // pred_fallthru
        _
      // Predicated region
      $region65: #{_lambda_.1} parent=59 // pred_check
        %p1076 = pneg %p228
      $region66: #{_lambda_.1} parent=59 // pred_check_branch
        %1078 = sbr.rel (%p1076) target = $region68
      $region67: #{_lambda_.1} parent=59 // pred_region
        %p1079 = scmp.lt.s32.totalorder %s22, 1
        %s1080 = scalar_select %p1079, %s22, 1
        %s1081 = scalar_lea.vmem %s8, %s1080
      $region68: #{_lambda_.1} parent=59 // pred_fallthru
        _
    $region60: #{_lambda_.1} parent=5 // pred_fallthru
      _
  $region6: #{_lambda_.1} parent=0 // loop_footer
    %s20 = sadd.s32 1, %s16
  $region7: #{_lambda_.1} parent=0 // loop_footer_branch
    %15 = sbr.rel target = $region3
  $region8: #{_lambda_.1} parent=0 // loop_exit
    _

</llo_original>
